<compile_context>
chip_gen: v7x
topology: tpu7x:2x2x1
jax: 0.10.0
libtpu: 0.0.40
codegen_flags: <defaults>
</compile_context>

<pallas_src>
import math
import numpy as np
import jax
import jax.numpy as jnp
from jax.experimental import pallas as pl
from jax.experimental.pallas import tpu as pltpu

# ----------------------- model hyper-parameters -----------------------
D_MODEL = 32
NHEAD = 4
DIM_FF = 64
SEQ = 8
BATCH = 2
HEAD_DIM = D_MODEL // NHEAD
LN_EPS = 1e-5

# Row offsets inside the packed parameter slab (lane width = 64).
_R_WQK = 0                   # rows   0: 32, cols 0:64 -> [Wq^T * scale | Wk^T]
_R_W1 = _R_WQK + D_MODEL     # rows  32: 64, cols 0:64 -> W1^T
_R_WMID = _R_W1 + D_MODEL    # rows  64:128, cols 0:32 -> W2^T; cols 32:64 -> [Wv^T ; Wo^T]
_R_VEC = _R_WMID + DIM_FF    # rows 128:134            -> bias / LayerNorm vectors
_N_ROWS = _R_VEC + 6


def _layer_norm(x, gamma, beta):
    # Biased variance, eps=1e-5 (PyTorch LayerNorm semantics).
    mean = jnp.mean(x, axis=-1, keepdims=True)
    var = jnp.mean(jnp.square(x - mean), axis=-1, keepdims=True)
    return (x - mean) * jax.lax.rsqrt(var + LN_EPS) * gamma + beta


def _mm(a, b):
    return jax.lax.dot_general(a, b, (((1,), (0,)), ((), ())),
                               preferred_element_type=jnp.float32)


def encoder_layer_kernel(x_ref, pos_ref, p_ref, out_ref):
    D, Dh = D_MODEL, HEAD_DIM

    x = x_ref[...]                          # (B*S, D): value / residual stream
    qk_in = x + pos_ref[...]                # q = k = src + pos

    # ---- packed parameters: 4 aligned, full-width loads ----
    w_qk = p_ref[_R_WQK:_R_WQK + D, :]          # (32, 64): [Wq^T*scale | Wk^T]
    w_ff1 = p_ref[_R_W1:_R_W1 + D, :]           # (32, 64): W1^T
    w_mid = p_ref[_R_WMID:_R_WMID + DIM_FF, :]  # (64, 64)
    vecs = p_ref[_R_VEC:_R_VEC + 6, :]          # (6, 64)

    w2_t = w_mid[:, 0:D]                        # (64, 32): W2^T
    wv_t = w_mid[0:D, D:2 * D]                  # (32, 32): Wv^T
    wo_t = w_mid[D:2 * D, D:2 * D]              # (32, 32): Wo^T

    b_qk = vecs[0:1, :]                         # (1, 64): [bq*scale | bk]
    b1 = vecs[1:2, :]                           # (1, 64)
    bv = vecs[2:3, 0:D]
    bo = vecs[2:3, D:2 * D]
    b2 = vecs[3:4, 0:D]
    g1 = vecs[3:4, D:2 * D]
    be1 = vecs[4:5, 0:D]
    g2 = vecs[4:5, D:2 * D]
    be2 = vecs[5:6, 0:D]

    # ---- fused Q|K projection (1 matmul) + V projection (1 matmul), all rows ----
    qk = _mm(qk_in, w_qk) + b_qk                # (B*S, 2D); q already scaled
    v = _mm(x, wv_t) + bv                       # (B*S, D)

    # ---- attention: only the SxS score / PV matmuls are per (batch, head) ----
    ctx_rows = []
    for b in range(BATCH):                      # per-batch rows = sublane slices
        r0 = b * SEQ
        q_b = qk[r0:r0 + SEQ, 0:D]              # (S, D)
        k_b = qk[r0:r0 + SEQ, D:2 * D]          # (S, D)
        v_b = v[r0:r0 + SEQ, :]                 # (S, D)
        heads = []
        for h in range(NHEAD):
            c0 = h * Dh
            qh = q_b[:, c0:c0 + Dh]             # (S, Dh)
            kh = k_b[:, c0:c0 + Dh]
            s = jax.lax.dot_general(qh, kh, (((1,), (1,)), ((), ())),
                                    preferred_element_type=jnp.float32)   # (S, S)
            s = s - jnp.max(s, axis=-1, keepdims=True)
            p = jnp.exp(s)
            p = p / jnp.sum(p, axis=-1, keepdims=True)   # exact reciprocal
            heads.append(_mm(p, v_b[:, c0:c0 + Dh]))     # (S, Dh)
        ctx_rows.append(jnp.concatenate(heads, axis=-1))  # (S, D): head concat
    ctx = jnp.concatenate(ctx_rows, axis=0)                # (B*S, D)

    # ---- output projection: one matmul over all rows ----
    attn = _mm(ctx, wo_t) + bo

    # ---- residual + norm1 (dropout1 = identity at inference) ----
    x1 = _layer_norm(x + attn, g1, be1)

    # ---- FFN: linear2(relu(linear1(x1))), full slab ----
    h1 = jnp.maximum(_mm(x1, w_ff1) + b1, 0.0)             # (B*S, FF)
    y = _mm(h1, w2_t) + b2                                 # (B*S, D)

    # ---- residual + norm2 (dropout2 = identity), single full-slab store ----
    out_ref[...] = _layer_norm(x1 + y, g2, be2).astype(out_ref.dtype)


def prepare_params(raw_params):
    """Pack the 16 torch-layout parameter tensors into one (134, 64) f32 slab
    (done once outside the kernel). Layout documented by the _R_* constants."""
    (wq, wk, wv, bq, bk, bv, wo, bo, w1, b1, w2, b2, g1, be1, g2, be2) = raw_params
    scale = 1.0 / math.sqrt(HEAD_DIM)

    w_qk = jnp.concatenate([wq.T * scale, wk.T], axis=1)        # (32, 64)
    w_ff1 = w1.T                                                # (32, 64)
    w_mid = jnp.concatenate(
        [w2.T, jnp.concatenate([wv.T, wo.T], axis=0)], axis=1)  # (64, 64)
    z32 = jnp.zeros((1, D_MODEL), jnp.float32)
    vecs = jnp.concatenate([
        jnp.concatenate([bq * scale, bk], axis=1),   # row 0: [bq*scale | bk]
        b1,                                          # row 1
        jnp.concatenate([bv, bo], axis=1),           # row 2
        jnp.concatenate([b2, g1], axis=1),           # row 3
        jnp.concatenate([be1, g2], axis=1),          # row 4
        jnp.concatenate([be2, z32], axis=1),         # row 5
    ], axis=0)                                       # (6, 64)
    slab = jnp.concatenate([w_qk, w_ff1, w_mid, vecs], axis=0)  # (134, 64)
    assert slab.shape == (_N_ROWS, 2 * D_MODEL)
    return slab.astype(jnp.float32)


def transformer_encoder_layer(src_sbd, pos_sbd, param_slab):
    """src_sbd, pos_sbd: (S, B, D) float32 — same layout as the PyTorch module."""
    S, B, D = src_sbd.shape
    # One wrapper transpose so per-batch rows are contiguous sublanes in the
    # kernel's (B*S, D) activation slab.
    x = jnp.transpose(src_sbd, (1, 0, 2)).reshape(B * S, D)
    p = jnp.transpose(pos_sbd, (1, 0, 2)).reshape(B * S, D)
    vmem = lambda: pl.BlockSpec(memory_space=pltpu.MemorySpace.VMEM)
    # TODO(synk): at realistic S/B add a row-grid with
    # dimension_semantics=("parallel",) so both v7x TensorCores are used; at
    # this toy size a single invocation (whole ~30 KB problem in VMEM) is best.
    out = pl.pallas_call(
        encoder_layer_kernel,
        out_shape=jax.ShapeDtypeStruct((B * S, D), src_sbd.dtype),
        in_specs=[vmem(), vmem(), vmem()],
        out_specs=vmem(),
    )(x, p, param_slab)
    return jnp.transpose(out.reshape(B, S, D), (1, 0, 2))


# ---------------------- float64 numpy reference ----------------------
def reference(src, pos, params):
    pr = [np.asarray(t, np.float64) for t in params]
    (wq, wk, wv, bq, bk, bv, wo, bo, w1, b1, w2, b2, g1, be1, g2, be2) = pr
    src = np.asarray(src, np.float64)
    pos = np.asarray(pos, np.float64)
    S, B, D = src.shape
    qk = src + pos
    q = qk @ wq.T + bq[0]
    k = qk @ wk.T + bk[0]
    v = src @ wv.T + bv[0]
    scale = 1.0 / math.sqrt(HEAD_DIM)

    def heads(x):  # (S,B,D) -> (B,H,S,Dh)
        return np.transpose(x.reshape(S, B, NHEAD, HEAD_DIM), (1, 2, 0, 3))

    qh, kh, vh = heads(q) * scale, heads(k), heads(v)
    s = np.einsum("bhqd,bhkd->bhqk", qh, kh)
    s = s - s.max(-1, keepdims=True)
    p = np.exp(s)
    p = p / p.sum(-1, keepdims=True)
    o = np.einsum("bhqk,bhkd->bhqd", p, vh)                 # (B,H,S,Dh)
    o = np.transpose(o, (2, 0, 1, 3)).reshape(S, B, D)
    attn = o @ wo.T + bo[0]

    def ln(x, g, b):
        m = x.mean(-1, keepdims=True)
        var = ((x - m) ** 2).mean(-1, keepdims=True)
        return (x - m) / np.sqrt(var + LN_EPS) * g[0] + b[0]

    x = ln(src + attn, g1, be1)
    y = np.maximum(x @ w1.T + b1[0], 0.0) @ w2.T + b2[0]
    return ln(x + y, g2, be2)


if __name__ == "__main__":
    key = jax.random.PRNGKey(0)
    ks = jax.random.split(key, 16)

    def init(k, shape, scale=0.1):
        return (scale * jax.random.normal(k, shape)).astype(jnp.float32)

    # nn.MultiheadAttention: in_proj split into Wq/Wk/Wv; out_proj (D, D)
    wq = init(ks[0], (D_MODEL, D_MODEL))
    wk = init(ks[1], (D_MODEL, D_MODEL))
    wv = init(ks[2], (D_MODEL, D_MODEL))
    bq = init(ks[3], (1, D_MODEL))
    bk = init(ks[4], (1, D_MODEL))
    bv = init(ks[5], (1, D_MODEL))
    wo = init(ks[6], (D_MODEL, D_MODEL))
    bo = init(ks[7], (1, D_MODEL))
    # FFN
    w1 = init(ks[8], (DIM_FF, D_MODEL))
    b1 = init(ks[9], (1, DIM_FF))
    w2 = init(ks[10], (D_MODEL, DIM_FF))
    b2 = init(ks[11], (1, D_MODEL))
    # LayerNorms (torch init: weight=1, bias=0)
    g1 = jnp.ones((1, D_MODEL), jnp.float32)
    be1 = jnp.zeros((1, D_MODEL), jnp.float32)
    g2 = jnp.ones((1, D_MODEL), jnp.float32)
    be2 = jnp.zeros((1, D_MODEL), jnp.float32)

    raw_params = (wq, wk, wv, bq, bk, bv, wo, bo, w1, b1, w2, b2, g1, be1, g2, be2)
    param_slab = prepare_params(raw_params)

    src = init(ks[12], (SEQ, BATCH, D_MODEL), scale=1.0)
    pos = init(ks[13], (SEQ, BATCH, D_MODEL), scale=1.0)

    out = jax.jit(transformer_encoder_layer)(src, pos, param_slab)
    out = jax.block_until_ready(out)

    ref = reference(src, pos, raw_params)
    assert out.shape == (SEQ, BATCH, D_MODEL)
    out_np = np.asarray(jax.device_get(out), np.float64)
    max_err = float(np.max(np.abs(out_np - ref)))
    assert np.allclose(out_np, ref, atol=2e-5, rtol=2e-5), f"max err {max_err}"

    # TODO(synk): dropout/dropout1/dropout2 are identity (inference mode); the
    # attn_mask / key_padding_mask branches (None by default) are not implemented.
    print("KERNEL_OK")
</pallas_src>

<mosaic_0001>
module attributes {stable_mosaic.version = 11 : i64} {
  func.func @encoder_layer_kernel(%arg0: memref<16x32xf32, #tpu.memory_space<vmem>>, %arg1: memref<16x32xf32, #tpu.memory_space<vmem>>, %arg2: memref<134x64xf32, #tpu.memory_space<vmem>>, %arg3: memref<16x32xf32, #tpu.memory_space<vmem>>) attributes {dimension_semantics = [], scalar_prefetch = 0 : i64, scratch_operands = 0 : i64, tpu.core_type = #tpu.core_type<tc>} {
    %c0 = arith.constant 0 : index
    %c0_0 = arith.constant 0 : index
    %0 = vector.load %arg0[%c0, %c0_0] : memref<16x32xf32, #tpu.memory_space<vmem>>, vector<16x32xf32>
    %c0_1 = arith.constant 0 : index
    %c0_2 = arith.constant 0 : index
    %1 = vector.load %arg1[%c0_1, %c0_2] : memref<16x32xf32, #tpu.memory_space<vmem>>, vector<16x32xf32>
    %2 = arith.addf %0, %1 : vector<16x32xf32>
    %c0_3 = arith.constant 0 : index
    %c0_4 = arith.constant 0 : index
    %3 = vector.load %arg2[%c0_3, %c0_4] : memref<134x64xf32, #tpu.memory_space<vmem>>, vector<32x64xf32>
    %c32 = arith.constant 32 : index
    %c0_5 = arith.constant 0 : index
    %4 = vector.load %arg2[%c32, %c0_5] : memref<134x64xf32, #tpu.memory_space<vmem>>, vector<32x64xf32>
    %c64 = arith.constant 64 : index
    %c0_6 = arith.constant 0 : index
    %5 = vector.load %arg2[%c64, %c0_6] : memref<134x64xf32, #tpu.memory_space<vmem>>, vector<64x64xf32>
    %c128 = arith.constant 128 : index
    %c0_7 = arith.constant 0 : index
    %6 = vector.load %arg2[%c128, %c0_7] : memref<134x64xf32, #tpu.memory_space<vmem>>, vector<6x64xf32>
    %7 = vector.extract_strided_slice %5 {offsets = [0, 0], sizes = [64, 32], strides = [1, 1]} : vector<64x64xf32> to vector<64x32xf32>
    %8 = vector.extract_strided_slice %5 {offsets = [0, 32], sizes = [32, 32], strides = [1, 1]} : vector<64x64xf32> to vector<32x32xf32>
    %9 = vector.extract_strided_slice %5 {offsets = [32, 32], sizes = [32, 32], strides = [1, 1]} : vector<64x64xf32> to vector<32x32xf32>
    %10 = vector.extract_strided_slice %6 {offsets = [0, 0], sizes = [1, 64], strides = [1, 1]} : vector<6x64xf32> to vector<1x64xf32>
    %11 = vector.extract_strided_slice %6 {offsets = [1, 0], sizes = [1, 64], strides = [1, 1]} : vector<6x64xf32> to vector<1x64xf32>
    %12 = vector.extract_strided_slice %6 {offsets = [2, 0], sizes = [1, 32], strides = [1, 1]} : vector<6x64xf32> to vector<1x32xf32>
    %13 = vector.extract_strided_slice %6 {offsets = [2, 32], sizes = [1, 32], strides = [1, 1]} : vector<6x64xf32> to vector<1x32xf32>
    %14 = vector.extract_strided_slice %6 {offsets = [3, 0], sizes = [1, 32], strides = [1, 1]} : vector<6x64xf32> to vector<1x32xf32>
    %15 = vector.extract_strided_slice %6 {offsets = [3, 32], sizes = [1, 32], strides = [1, 1]} : vector<6x64xf32> to vector<1x32xf32>
    %16 = vector.extract_strided_slice %6 {offsets = [4, 0], sizes = [1, 32], strides = [1, 1]} : vector<6x64xf32> to vector<1x32xf32>
    %17 = vector.extract_strided_slice %6 {offsets = [4, 32], sizes = [1, 32], strides = [1, 1]} : vector<6x64xf32> to vector<1x32xf32>
    %18 = vector.extract_strided_slice %6 {offsets = [5, 0], sizes = [1, 32], strides = [1, 1]} : vector<6x64xf32> to vector<1x32xf32>
    %cst = arith.constant dense<0.000000e+00> : vector<16x64xf32>
    %19 = tpu.matmul %2, %3, %cst {dimension_numbers = #tpu.dot_dimension_numbers<[1], [0], [0], [1], [0, 0, 1, 1], [], []>} : vector<16x32xf32>, vector<32x64xf32>, vector<16x64xf32> -> vector<16x64xf32>
    %20 = vector.broadcast %10 : vector<1x64xf32> to vector<16x64xf32>
    %21 = arith.addf %19, %20 : vector<16x64xf32>
    %cst_8 = arith.constant dense<0.000000e+00> : vector<16x32xf32>
    %22 = tpu.matmul %0, %8, %cst_8 {dimension_numbers = #tpu.dot_dimension_numbers<[1], [0], [0], [1], [0, 0, 1, 1], [], []>} : vector<16x32xf32>, vector<32x32xf32>, vector<16x32xf32> -> vector<16x32xf32>
    %23 = vector.broadcast %12 : vector<1x32xf32> to vector<16x32xf32>
    %24 = arith.addf %22, %23 : vector<16x32xf32>
    %25 = vector.extract_strided_slice %21 {offsets = [0, 0], sizes = [8, 32], strides = [1, 1]} : vector<16x64xf32> to vector<8x32xf32>
    %26 = vector.extract_strided_slice %21 {offsets = [0, 32], sizes = [8, 32], strides = [1, 1]} : vector<16x64xf32> to vector<8x32xf32>
    %27 = vector.extract_strided_slice %24 {offsets = [0, 0], sizes = [8, 32], strides = [1, 1]} : vector<16x32xf32> to vector<8x32xf32>
    %28 = vector.extract_strided_slice %25 {offsets = [0, 0], sizes = [8, 8], strides = [1, 1]} : vector<8x32xf32> to vector<8x8xf32>
    %29 = vector.extract_strided_slice %26 {offsets = [0, 0], sizes = [8, 8], strides = [1, 1]} : vector<8x32xf32> to vector<8x8xf32>
    %cst_9 = arith.constant dense<0.000000e+00> : vector<8x8xf32>
    %30 = tpu.matmul %28, %29, %cst_9 {dimension_numbers = #tpu.dot_dimension_numbers<[1], [1], [0], [0], [0, 0, 1, 0], [], []>} : vector<8x8xf32>, vector<8x8xf32>, vector<8x8xf32> -> vector<8x8xf32>
    %cst_10 = arith.constant dense<0xFF800000> : vector<8xf32>
    %31 = vector.multi_reduction <maximumf>, %30, %cst_10 [1] : vector<8x8xf32> to vector<8xf32>
    %32 = vector.shape_cast %31 : vector<8xf32> to vector<8x1xf32>
    %33 = vector.broadcast %32 : vector<8x1xf32> to vector<8x8xf32>
    %34 = arith.subf %30, %33 : vector<8x8xf32>
    %35 = math.exp %34 : vector<8x8xf32>
    %cst_11 = arith.constant dense<0.000000e+00> : vector<8xf32>
    %36 = vector.multi_reduction <add>, %35, %cst_11 [1] : vector<8x8xf32> to vector<8xf32>
    %37 = vector.shape_cast %36 : vector<8xf32> to vector<8x1xf32>
    %38 = vector.broadcast %37 : vector<8x1xf32> to vector<8x8xf32>
    %39 = arith.divf %35, %38 : vector<8x8xf32>
    %40 = vector.extract_strided_slice %27 {offsets = [0, 0], sizes = [8, 8], strides = [1, 1]} : vector<8x32xf32> to vector<8x8xf32>
    %cst_12 = arith.constant dense<0.000000e+00> : vector<8x8xf32>
    %41 = tpu.matmul %39, %40, %cst_12 {dimension_numbers = #tpu.dot_dimension_numbers<[1], [0], [0], [1], [0, 0, 1, 1], [], []>} : vector<8x8xf32>, vector<8x8xf32>, vector<8x8xf32> -> vector<8x8xf32>
    %42 = vector.extract_strided_slice %25 {offsets = [0, 8], sizes = [8, 8], strides = [1, 1]} : vector<8x32xf32> to vector<8x8xf32>
    %43 = vector.extract_strided_slice %26 {offsets = [0, 8], sizes = [8, 8], strides = [1, 1]} : vector<8x32xf32> to vector<8x8xf32>
    %cst_13 = arith.constant dense<0.000000e+00> : vector<8x8xf32>
    %44 = tpu.matmul %42, %43, %cst_13 {dimension_numbers = #tpu.dot_dimension_numbers<[1], [1], [0], [0], [0, 0, 1, 0], [], []>} : vector<8x8xf32>, vector<8x8xf32>, vector<8x8xf32> -> vector<8x8xf32>
    %cst_14 = arith.constant dense<0xFF800000> : vector<8xf32>
    %45 = vector.multi_reduction <maximumf>, %44, %cst_14 [1] : vector<8x8xf32> to vector<8xf32>
    %46 = vector.shape_cast %45 : vector<8xf32> to vector<8x1xf32>
    %47 = vector.broadcast %46 : vector<8x1xf32> to vector<8x8xf32>
    %48 = arith.subf %44, %47 : vector<8x8xf32>
    %49 = math.exp %48 : vector<8x8xf32>
    %cst_15 = arith.constant dense<0.000000e+00> : vector<8xf32>
    %50 = vector.multi_reduction <add>, %49, %cst_15 [1] : vector<8x8xf32> to vector<8xf32>
    %51 = vector.shape_cast %50 : vector<8xf32> to vector<8x1xf32>
    %52 = vector.broadcast %51 : vector<8x1xf32> to vector<8x8xf32>
    %53 = arith.divf %49, %52 : vector<8x8xf32>
    %54 = vector.extract_strided_slice %27 {offsets = [0, 8], sizes = [8, 8], strides = [1, 1]} : vector<8x32xf32> to vector<8x8xf32>
    %cst_16 = arith.constant dense<0.000000e+00> : vector<8x8xf32>
    %55 = tpu.matmul %53, %54, %cst_16 {dimension_numbers = #tpu.dot_dimension_numbers<[1], [0], [0], [1], [0, 0, 1, 1], [], []>} : vector<8x8xf32>, vector<8x8xf32>, vector<8x8xf32> -> vector<8x8xf32>
    %56 = vector.extract_strided_slice %25 {offsets = [0, 16], sizes = [8, 8], strides = [1, 1]} : vector<8x32xf32> to vector<8x8xf32>
    %57 = vector.extract_strided_slice %26 {offsets = [0, 16], sizes = [8, 8], strides = [1, 1]} : vector<8x32xf32> to vector<8x8xf32>
    %cst_17 = arith.constant dense<0.000000e+00> : vector<8x8xf32>
    %58 = tpu.matmul %56, %57, %cst_17 {dimension_numbers = #tpu.dot_dimension_numbers<[1], [1], [0], [0], [0, 0, 1, 0], [], []>} : vector<8x8xf32>, vector<8x8xf32>, vector<8x8xf32> -> vector<8x8xf32>
    %cst_18 = arith.constant dense<0xFF800000> : vector<8xf32>
    %59 = vector.multi_reduction <maximumf>, %58, %cst_18 [1] : vector<8x8xf32> to vector<8xf32>
    %60 = vector.shape_cast %59 : vector<8xf32> to vector<8x1xf32>
    %61 = vector.broadcast %60 : vector<8x1xf32> to vector<8x8xf32>
    %62 = arith.subf %58, %61 : vector<8x8xf32>
    %63 = math.exp %62 : vector<8x8xf32>
    %cst_19 = arith.constant dense<0.000000e+00> : vector<8xf32>
    %64 = vector.multi_reduction <add>, %63, %cst_19 [1] : vector<8x8xf32> to vector<8xf32>
    %65 = vector.shape_cast %64 : vector<8xf32> to vector<8x1xf32>
    %66 = vector.broadcast %65 : vector<8x1xf32> to vector<8x8xf32>
    %67 = arith.divf %63, %66 : vector<8x8xf32>
    %68 = vector.extract_strided_slice %27 {offsets = [0, 16], sizes = [8, 8], strides = [1, 1]} : vector<8x32xf32> to vector<8x8xf32>
    %cst_20 = arith.constant dense<0.000000e+00> : vector<8x8xf32>
    %69 = tpu.matmul %67, %68, %cst_20 {dimension_numbers = #tpu.dot_dimension_numbers<[1], [0], [0], [1], [0, 0, 1, 1], [], []>} : vector<8x8xf32>, vector<8x8xf32>, vector<8x8xf32> -> vector<8x8xf32>
    %70 = vector.extract_strided_slice %25 {offsets = [0, 24], sizes = [8, 8], strides = [1, 1]} : vector<8x32xf32> to vector<8x8xf32>
    %71 = vector.extract_strided_slice %26 {offsets = [0, 24], sizes = [8, 8], strides = [1, 1]} : vector<8x32xf32> to vector<8x8xf32>
    %cst_21 = arith.constant dense<0.000000e+00> : vector<8x8xf32>
    %72 = tpu.matmul %70, %71, %cst_21 {dimension_numbers = #tpu.dot_dimension_numbers<[1], [1], [0], [0], [0, 0, 1, 0], [], []>} : vector<8x8xf32>, vector<8x8xf32>, vector<8x8xf32> -> vector<8x8xf32>
    %cst_22 = arith.constant dense<0xFF800000> : vector<8xf32>
    %73 = vector.multi_reduction <maximumf>, %72, %cst_22 [1] : vector<8x8xf32> to vector<8xf32>
    %74 = vector.shape_cast %73 : vector<8xf32> to vector<8x1xf32>
    %75 = vector.broadcast %74 : vector<8x1xf32> to vector<8x8xf32>
    %76 = arith.subf %72, %75 : vector<8x8xf32>
    %77 = math.exp %76 : vector<8x8xf32>
    %cst_23 = arith.constant dense<0.000000e+00> : vector<8xf32>
    %78 = vector.multi_reduction <add>, %77, %cst_23 [1] : vector<8x8xf32> to vector<8xf32>
    %79 = vector.shape_cast %78 : vector<8xf32> to vector<8x1xf32>
    %80 = vector.broadcast %79 : vector<8x1xf32> to vector<8x8xf32>
    %81 = arith.divf %77, %80 : vector<8x8xf32>
    %82 = vector.extract_strided_slice %27 {offsets = [0, 24], sizes = [8, 8], strides = [1, 1]} : vector<8x32xf32> to vector<8x8xf32>
    %cst_24 = arith.constant dense<0.000000e+00> : vector<8x8xf32>
    %83 = tpu.matmul %81, %82, %cst_24 {dimension_numbers = #tpu.dot_dimension_numbers<[1], [0], [0], [1], [0, 0, 1, 1], [], []>} : vector<8x8xf32>, vector<8x8xf32>, vector<8x8xf32> -> vector<8x8xf32>
    %84 = tpu.concatenate %41, %55, %69, %83 in 1 : vector<8x8xf32>, vector<8x8xf32>, vector<8x8xf32>, vector<8x8xf32> -> vector<8x32xf32>
    %85 = vector.extract_strided_slice %21 {offsets = [8, 0], sizes = [8, 32], strides = [1, 1]} : vector<16x64xf32> to vector<8x32xf32>
    %86 = vector.extract_strided_slice %21 {offsets = [8, 32], sizes = [8, 32], strides = [1, 1]} : vector<16x64xf32> to vector<8x32xf32>
    %87 = vector.extract_strided_slice %24 {offsets = [8, 0], sizes = [8, 32], strides = [1, 1]} : vector<16x32xf32> to vector<8x32xf32>
    %88 = vector.extract_strided_slice %85 {offsets = [0, 0], sizes = [8, 8], strides = [1, 1]} : vector<8x32xf32> to vector<8x8xf32>
    %89 = vector.extract_strided_slice %86 {offsets = [0, 0], sizes = [8, 8], strides = [1, 1]} : vector<8x32xf32> to vector<8x8xf32>
    %cst_25 = arith.constant dense<0.000000e+00> : vector<8x8xf32>
    %90 = tpu.matmul %88, %89, %cst_25 {dimension_numbers = #tpu.dot_dimension_numbers<[1], [1], [0], [0], [0, 0, 1, 0], [], []>} : vector<8x8xf32>, vector<8x8xf32>, vector<8x8xf32> -> vector<8x8xf32>
    %cst_26 = arith.constant dense<0xFF800000> : vector<8xf32>
    %91 = vector.multi_reduction <maximumf>, %90, %cst_26 [1] : vector<8x8xf32> to vector<8xf32>
    %92 = vector.shape_cast %91 : vector<8xf32> to vector<8x1xf32>
    %93 = vector.broadcast %92 : vector<8x1xf32> to vector<8x8xf32>
    %94 = arith.subf %90, %93 : vector<8x8xf32>
    %95 = math.exp %94 : vector<8x8xf32>
    %cst_27 = arith.constant dense<0.000000e+00> : vector<8xf32>
    %96 = vector.multi_reduction <add>, %95, %cst_27 [1] : vector<8x8xf32> to vector<8xf32>
    %97 = vector.shape_cast %96 : vector<8xf32> to vector<8x1xf32>
    %98 = vector.broadcast %97 : vector<8x1xf32> to vector<8x8xf32>
    %99 = arith.divf %95, %98 : vector<8x8xf32>
    %100 = vector.extract_strided_slice %87 {offsets = [0, 0], sizes = [8, 8], strides = [1, 1]} : vector<8x32xf32> to vector<8x8xf32>
    %cst_28 = arith.constant dense<0.000000e+00> : vector<8x8xf32>
    %101 = tpu.matmul %99, %100, %cst_28 {dimension_numbers = #tpu.dot_dimension_numbers<[1], [0], [0], [1], [0, 0, 1, 1], [], []>} : vector<8x8xf32>, vector<8x8xf32>, vector<8x8xf32> -> vector<8x8xf32>
    %102 = vector.extract_strided_slice %85 {offsets = [0, 8], sizes = [8, 8], strides = [1, 1]} : vector<8x32xf32> to vector<8x8xf32>
    %103 = vector.extract_strided_slice %86 {offsets = [0, 8], sizes = [8, 8], strides = [1, 1]} : vector<8x32xf32> to vector<8x8xf32>
    %cst_29 = arith.constant dense<0.000000e+00> : vector<8x8xf32>
    %104 = tpu.matmul %102, %103, %cst_29 {dimension_numbers = #tpu.dot_dimension_numbers<[1], [1], [0], [0], [0, 0, 1, 0], [], []>} : vector<8x8xf32>, vector<8x8xf32>, vector<8x8xf32> -> vector<8x8xf32>
    %cst_30 = arith.constant dense<0xFF800000> : vector<8xf32>
    %105 = vector.multi_reduction <maximumf>, %104, %cst_30 [1] : vector<8x8xf32> to vector<8xf32>
    %106 = vector.shape_cast %105 : vector<8xf32> to vector<8x1xf32>
    %107 = vector.broadcast %106 : vector<8x1xf32> to vector<8x8xf32>
    %108 = arith.subf %104, %107 : vector<8x8xf32>
    %109 = math.exp %108 : vector<8x8xf32>
    %cst_31 = arith.constant dense<0.000000e+00> : vector<8xf32>
    %110 = vector.multi_reduction <add>, %109, %cst_31 [1] : vector<8x8xf32> to vector<8xf32>
    %111 = vector.shape_cast %110 : vector<8xf32> to vector<8x1xf32>
    %112 = vector.broadcast %111 : vector<8x1xf32> to vector<8x8xf32>
    %113 = arith.divf %109, %112 : vector<8x8xf32>
    %114 = vector.extract_strided_slice %87 {offsets = [0, 8], sizes = [8, 8], strides = [1, 1]} : vector<8x32xf32> to vector<8x8xf32>
    %cst_32 = arith.constant dense<0.000000e+00> : vector<8x8xf32>
    %115 = tpu.matmul %113, %114, %cst_32 {dimension_numbers = #tpu.dot_dimension_numbers<[1], [0], [0], [1], [0, 0, 1, 1], [], []>} : vector<8x8xf32>, vector<8x8xf32>, vector<8x8xf32> -> vector<8x8xf32>
    %116 = vector.extract_strided_slice %85 {offsets = [0, 16], sizes = [8, 8], strides = [1, 1]} : vector<8x32xf32> to vector<8x8xf32>
    %117 = vector.extract_strided_slice %86 {offsets = [0, 16], sizes = [8, 8], strides = [1, 1]} : vector<8x32xf32> to vector<8x8xf32>
    %cst_33 = arith.constant dense<0.000000e+00> : vector<8x8xf32>
    %118 = tpu.matmul %116, %117, %cst_33 {dimension_numbers = #tpu.dot_dimension_numbers<[1], [1], [0], [0], [0, 0, 1, 0], [], []>} : vector<8x8xf32>, vector<8x8xf32>, vector<8x8xf32> -> vector<8x8xf32>
    %cst_34 = arith.constant dense<0xFF800000> : vector<8xf32>
    %119 = vector.multi_reduction <maximumf>, %118, %cst_34 [1] : vector<8x8xf32> to vector<8xf32>
    %120 = vector.shape_cast %119 : vector<8xf32> to vector<8x1xf32>
    %121 = vector.broadcast %120 : vector<8x1xf32> to vector<8x8xf32>
    %122 = arith.subf %118, %121 : vector<8x8xf32>
    %123 = math.exp %122 : vector<8x8xf32>
    %cst_35 = arith.constant dense<0.000000e+00> : vector<8xf32>
    %124 = vector.multi_reduction <add>, %123, %cst_35 [1] : vector<8x8xf32> to vector<8xf32>
    %125 = vector.shape_cast %124 : vector<8xf32> to vector<8x1xf32>
    %126 = vector.broadcast %125 : vector<8x1xf32> to vector<8x8xf32>
    %127 = arith.divf %123, %126 : vector<8x8xf32>
    %128 = vector.extract_strided_slice %87 {offsets = [0, 16], sizes = [8, 8], strides = [1, 1]} : vector<8x32xf32> to vector<8x8xf32>
    %cst_36 = arith.constant dense<0.000000e+00> : vector<8x8xf32>
    %129 = tpu.matmul %127, %128, %cst_36 {dimension_numbers = #tpu.dot_dimension_numbers<[1], [0], [0], [1], [0, 0, 1, 1], [], []>} : vector<8x8xf32>, vector<8x8xf32>, vector<8x8xf32> -> vector<8x8xf32>
    %130 = vector.extract_strided_slice %85 {offsets = [0, 24], sizes = [8, 8], strides = [1, 1]} : vector<8x32xf32> to vector<8x8xf32>
    %131 = vector.extract_strided_slice %86 {offsets = [0, 24], sizes = [8, 8], strides = [1, 1]} : vector<8x32xf32> to vector<8x8xf32>
    %cst_37 = arith.constant dense<0.000000e+00> : vector<8x8xf32>
    %132 = tpu.matmul %130, %131, %cst_37 {dimension_numbers = #tpu.dot_dimension_numbers<[1], [1], [0], [0], [0, 0, 1, 0], [], []>} : vector<8x8xf32>, vector<8x8xf32>, vector<8x8xf32> -> vector<8x8xf32>
    %cst_38 = arith.constant dense<0xFF800000> : vector<8xf32>
    %133 = vector.multi_reduction <maximumf>, %132, %cst_38 [1] : vector<8x8xf32> to vector<8xf32>
    %134 = vector.shape_cast %133 : vector<8xf32> to vector<8x1xf32>
    %135 = vector.broadcast %134 : vector<8x1xf32> to vector<8x8xf32>
    %136 = arith.subf %132, %135 : vector<8x8xf32>
    %137 = math.exp %136 : vector<8x8xf32>
    %cst_39 = arith.constant dense<0.000000e+00> : vector<8xf32>
    %138 = vector.multi_reduction <add>, %137, %cst_39 [1] : vector<8x8xf32> to vector<8xf32>
    %139 = vector.shape_cast %138 : vector<8xf32> to vector<8x1xf32>
    %140 = vector.broadcast %139 : vector<8x1xf32> to vector<8x8xf32>
    %141 = arith.divf %137, %140 : vector<8x8xf32>
    %142 = vector.extract_strided_slice %87 {offsets = [0, 24], sizes = [8, 8], strides = [1, 1]} : vector<8x32xf32> to vector<8x8xf32>
    %cst_40 = arith.constant dense<0.000000e+00> : vector<8x8xf32>
    %143 = tpu.matmul %141, %142, %cst_40 {dimension_numbers = #tpu.dot_dimension_numbers<[1], [0], [0], [1], [0, 0, 1, 1], [], []>} : vector<8x8xf32>, vector<8x8xf32>, vector<8x8xf32> -> vector<8x8xf32>
    %144 = tpu.concatenate %101, %115, %129, %143 in 1 : vector<8x8xf32>, vector<8x8xf32>, vector<8x8xf32>, vector<8x8xf32> -> vector<8x32xf32>
    %145 = tpu.concatenate %84, %144 in 0 : vector<8x32xf32>, vector<8x32xf32> -> vector<16x32xf32>
    %cst_41 = arith.constant dense<0.000000e+00> : vector<16x32xf32>
    %146 = tpu.matmul %145, %9, %cst_41 {dimension_numbers = #tpu.dot_dimension_numbers<[1], [0], [0], [1], [0, 0, 1, 1], [], []>} : vector<16x32xf32>, vector<32x32xf32>, vector<16x32xf32> -> vector<16x32xf32>
    %147 = vector.broadcast %13 : vector<1x32xf32> to vector<16x32xf32>
    %148 = arith.addf %146, %147 : vector<16x32xf32>
    %149 = arith.addf %0, %148 : vector<16x32xf32>
    %cst_42 = arith.constant dense<0.000000e+00> : vector<16xf32>
    %150 = vector.multi_reduction <add>, %149, %cst_42 [1] : vector<16x32xf32> to vector<16xf32>
    %151 = vector.shape_cast %150 : vector<16xf32> to vector<16x1xf32>
    %cst_43 = arith.constant 3.200000e+01 : f32
    %152 = vector.broadcast %cst_43 : f32 to vector<16x1xf32>
    %153 = arith.divf %151, %152 : vector<16x1xf32>
    %154 = vector.broadcast %153 : vector<16x1xf32> to vector<16x32xf32>
    %155 = arith.subf %149, %154 : vector<16x32xf32>
    %156 = arith.mulf %155, %155 : vector<16x32xf32>
    %cst_44 = arith.constant dense<0.000000e+00> : vector<16xf32>
    %157 = vector.multi_reduction <add>, %156, %cst_44 [1] : vector<16x32xf32> to vector<16xf32>
    %158 = vector.shape_cast %157 : vector<16xf32> to vector<16x1xf32>
    %cst_45 = arith.constant 3.200000e+01 : f32
    %159 = vector.broadcast %cst_45 : f32 to vector<16x1xf32>
    %160 = arith.divf %158, %159 : vector<16x1xf32>
    %161 = vector.broadcast %153 : vector<16x1xf32> to vector<16x32xf32>
    %162 = arith.subf %149, %161 : vector<16x32xf32>
    %cst_46 = arith.constant 9.99999974E-6 : f32
    %163 = vector.broadcast %cst_46 : f32 to vector<16x1xf32>
    %164 = arith.addf %160, %163 : vector<16x1xf32>
    %165 = math.rsqrt %164 : vector<16x1xf32>
    %166 = vector.broadcast %165 : vector<16x1xf32> to vector<16x32xf32>
    %167 = arith.mulf %162, %166 : vector<16x32xf32>
    %168 = vector.broadcast %15 : vector<1x32xf32> to vector<16x32xf32>
    %169 = arith.mulf %167, %168 : vector<16x32xf32>
    %170 = vector.broadcast %16 : vector<1x32xf32> to vector<16x32xf32>
    %171 = arith.addf %169, %170 : vector<16x32xf32>
    %cst_47 = arith.constant dense<0.000000e+00> : vector<16x64xf32>
    %172 = tpu.matmul %171, %4, %cst_47 {dimension_numbers = #tpu.dot_dimension_numbers<[1], [0], [0], [1], [0, 0, 1, 1], [], []>} : vector<16x32xf32>, vector<32x64xf32>, vector<16x64xf32> -> vector<16x64xf32>
    %173 = vector.broadcast %11 : vector<1x64xf32> to vector<16x64xf32>
    %174 = arith.addf %172, %173 : vector<16x64xf32>
    %cst_48 = arith.constant 0.000000e+00 : f32
    %175 = vector.broadcast %cst_48 : f32 to vector<16x64xf32>
    %176 = arith.maximumf %174, %175 : vector<16x64xf32>
    %cst_49 = arith.constant dense<0.000000e+00> : vector<16x32xf32>
    %177 = tpu.matmul %176, %7, %cst_49 {dimension_numbers = #tpu.dot_dimension_numbers<[1], [0], [0], [1], [0, 0, 1, 1], [], []>} : vector<16x64xf32>, vector<64x32xf32>, vector<16x32xf32> -> vector<16x32xf32>
    %178 = vector.broadcast %14 : vector<1x32xf32> to vector<16x32xf32>
    %179 = arith.addf %177, %178 : vector<16x32xf32>
    %180 = arith.addf %171, %179 : vector<16x32xf32>
    %cst_50 = arith.constant dense<0.000000e+00> : vector<16xf32>
    %181 = vector.multi_reduction <add>, %180, %cst_50 [1] : vector<16x32xf32> to vector<16xf32>
    %182 = vector.shape_cast %181 : vector<16xf32> to vector<16x1xf32>
    %cst_51 = arith.constant 3.200000e+01 : f32
    %183 = vector.broadcast %cst_51 : f32 to vector<16x1xf32>
    %184 = arith.divf %182, %183 : vector<16x1xf32>
    %185 = vector.broadcast %184 : vector<16x1xf32> to vector<16x32xf32>
    %186 = arith.subf %180, %185 : vector<16x32xf32>
    %187 = arith.mulf %186, %186 : vector<16x32xf32>
    %cst_52 = arith.constant dense<0.000000e+00> : vector<16xf32>
    %188 = vector.multi_reduction <add>, %187, %cst_52 [1] : vector<16x32xf32> to vector<16xf32>
    %189 = vector.shape_cast %188 : vector<16xf32> to vector<16x1xf32>
    %cst_53 = arith.constant 3.200000e+01 : f32
    %190 = vector.broadcast %cst_53 : f32 to vector<16x1xf32>
    %191 = arith.divf %189, %190 : vector<16x1xf32>
    %192 = vector.broadcast %184 : vector<16x1xf32> to vector<16x32xf32>
    %193 = arith.subf %180, %192 : vector<16x32xf32>
    %cst_54 = arith.constant 9.99999974E-6 : f32
    %194 = vector.broadcast %cst_54 : f32 to vector<16x1xf32>
    %195 = arith.addf %191, %194 : vector<16x1xf32>
    %196 = math.rsqrt %195 : vector<16x1xf32>
    %197 = vector.broadcast %196 : vector<16x1xf32> to vector<16x32xf32>
    %198 = arith.mulf %193, %197 : vector<16x32xf32>
    %199 = vector.broadcast %17 : vector<1x32xf32> to vector<16x32xf32>
    %200 = arith.mulf %198, %199 : vector<16x32xf32>
    %201 = vector.broadcast %18 : vector<1x32xf32> to vector<16x32xf32>
    %202 = arith.addf %200, %201 : vector<16x32xf32>
    %c0_55 = arith.constant 0 : index
    %c0_56 = arith.constant 0 : index
    %203 = vector.load %arg3[%c0_55, %c0_56] : memref<16x32xf32, #tpu.memory_space<vmem>>, vector<16x32xf32>
    tpu.vector_store %arg3[%c0_55, %c0_56], %202 {strides = array<i32>} : memref<16x32xf32, #tpu.memory_space<vmem>>, vector<16x32xf32>,
    return
  }
}

</mosaic_0001>

<llo_original>
// kernel: transformer_encoder_layer.1
$region0: #{transformer_encoder_layer.1}
  #allocation0 [shape = 'u32[]', space=smem, size = 0x4, offset = 0x4, fixed_abs, tag = 'smem constant byte address 0x4 - core index']
  #allocation1 [shape = 'u32[144,128]{1,0:T(1,128)}', space=vmem, size = 0x12000, scoped, tag = 'internal scratch']
  %s0 = inlined_call_operand.vmem [shape: f32[16,32], index: 0, kind: input, shape index: {}]
  %s1 = inlined_call_operand.vmem [shape: f32[16,32], index: 1, kind: input, shape index: {}]
  %s2 = inlined_call_operand.vmem [shape: f32[134,64], index: 2, kind: input, shape index: {}]
  %s3 = inlined_call_operand.vmem [shape: f32[16,32], index: 3, kind: output, shape index: {}]
  %s4 = sld [smem:[#allocation0]]
  $region22: #{transformer_encoder_layer.1} parent=0
    _
  %s6 = ssub.s32 1, %s4
  %s7 = scalar_select 0, %s6, %s4
  // Predicated region
  $region2: #{transformer_encoder_layer.1} parent=0 // pred_check
    _
  $region3: #{transformer_encoder_layer.1} parent=0 // pred_check_branch
    %9 = sbr.rel (0) target = $region5
  $region4: #{transformer_encoder_layer.1} parent=0 // pred_region
    _
  $region5: #{transformer_encoder_layer.1} parent=0 // pred_fallthru
    _
  // Predicated region
  $region6: #{transformer_encoder_layer.1} parent=0 // pred_check
    _
  $region7: #{transformer_encoder_layer.1} parent=0 // pred_check_branch
    %11 = sbr.rel (0) target = $region9
  $region8: #{transformer_encoder_layer.1} parent=0 // pred_region
    _
  $region9: #{transformer_encoder_layer.1} parent=0 // pred_fallthru
    _
  // Predicated region
  $region10: #{transformer_encoder_layer.1} parent=0 // pred_check
    _
  $region11: #{transformer_encoder_layer.1} parent=0 // pred_check_branch
    %13 = sbr.rel (0) target = $region13
  $region12: #{transformer_encoder_layer.1} parent=0 // pred_region
    _
  $region13: #{transformer_encoder_layer.1} parent=0 // pred_fallthru
    _
  %v14 = vld [vmem:[%s0] sm:$0xff]
  %v15 = vld [vmem:[%s0 + $0x8] sm:$0xff]
  %v16 = vld [vmem:[%s1] sm:$0xff]
  %v17 = vld [vmem:[%s1 + $0x8] sm:$0xff]
  %v18 = vadd.f32 %v14, %v16
  %v19 = vadd.f32 %v15, %v17
  %v20 = vld [vmem:[%s2] sm:$0xff]
  %v21 = vld [vmem:[%s2 + $0x8] sm:$0xff]
  %v22 = vld [vmem:[%s2 + $0x10] sm:$0xff]
  %v23 = vld [vmem:[%s2 + $0x18] sm:$0xff]
  %v24 = vld [vmem:[%s2 + $0x20] sm:$0xff]
  %v25 = vld [vmem:[%s2 + $0x28] sm:$0xff]
  %v26 = vld [vmem:[%s2 + $0x30] sm:$0xff]
  %v27 = vld [vmem:[%s2 + $0x38] sm:$0xff]
  %v28 = vld [vmem:[%s2 + $0x40] sm:$0xff]
  %v29 = vld [vmem:[%s2 + $0x48] sm:$0xff]
  %v30 = vld [vmem:[%s2 + $0x50] sm:$0xff]
  %v31 = vld [vmem:[%s2 + $0x58] sm:$0xff]
  %v32 = vld [vmem:[%s2 + $0x60] sm:$0xff]
  %v33 = vld [vmem:[%s2 + $0x68] sm:$0xff]
  %v34 = vld [vmem:[%s2 + $0x70] sm:$0xff]
  %v35 = vld [vmem:[%s2 + $0x78] sm:$0xff]
  %v36 = vld [vmem:[%s2 + $0x80] sm:$0x3f]
  %v37 = vlaneseq
  %v38 = vshrl.u32 %v37, 7
  %v39 = vsub.s32 0, %v38
  %v40 = vrot.slane %v36, %v39
  %vm41 = vcmask 261120
  %v43 = vsel %vm41, %v18, 0
  %v46 = vsel %vm41, %v19, 0
  %48 = vmatprep.subr.mxu0 0.0
  %49 = vmatpush1.msra.mxu0 %v20
  %50 = vmatprep.subr.mxu0 0.0
  %51 = vmatpush1.msra.mxu0 %v21
  %52 = vmatprep.subr.mxu0 0.0
  %53 = vmatpush1.msra.mxu0 %v22
  %54 = vmatprep.subr.mxu0 0.0
  %55 = vmatpush1.msra.mxu0 %v23
  %56 = vmatprep.subr.mxu0 0.0
  %57 = vmatpush1.msra.mxu0 0.0
  %58 = vmatprep.subr.mxu0 0.0
  %59 = vmatpush1.msra.mxu0 0.0
  %60 = vmatprep.subr.mxu0 0.0
  %61 = vmatpush1.msra.mxu0 0.0
  %62 = vmatprep.subr.mxu0 0.0
  %63 = vmatpush1.msra.mxu0 0.0
  %64 = vmatprep.subr.mxu0 0.0
  %65 = vmatpush1.msra.mxu0 0.0
  %66 = vmatprep.subr.mxu0 0.0
  %67 = vmatpush1.msra.mxu0 0.0
  %68 = vmatprep.subr.mxu0 0.0
  %69 = vmatpush1.msra.mxu0 0.0
  %70 = vmatprep.subr.mxu0 0.0
  %71 = vmatpush1.msra.mxu0 0.0
  %72 = vmatprep.subr.mxu0 0.0
  %73 = vmatpush1.msra.mxu0 0.0
  %74 = vmatprep.subr.mxu0 0.0
  %75 = vmatpush1.msra.mxu0 0.0
  %76 = vmatprep.subr.mxu0 0.0
  %77 = vmatpush1.msra.mxu0 0.0
  %78 = vmatprep.subr.mxu0 0.0
  %79 = vmatpush1.msra.mxu0 0.0
  %80 = vmatprep.subr.mxu0 0.0
  %81 = vmatpush1.msra.mxu0 0.0
  %82 = vmatprep.subr.mxu0 0.0
  %83 = vmatpush1.msra.mxu0 0.0
  %84 = vmatprep.subr.mxu0 0.0
  %85 = vmatpush1.msra.mxu0 0.0
  %86 = vmatprep.subr.mxu0 0.0
  %87 = vmatpush1.msra.mxu0 0.0
  %88 = vmatprep.subr.mxu0 0.0
  %89 = vmatpush1.msra.mxu0 0.0
  %90 = vmatprep.subr.mxu0 0.0
  %91 = vmatpush1.msra.mxu0 0.0
  %92 = vmatprep.subr.mxu0 0.0
  %93 = vmatpush1.msra.mxu0 0.0
  %94 = vmatprep.subr.mxu0 0.0
  %95 = vmatpush1.msra.mxu0 0.0
  %96 = vmatprep.subr.mxu0 0.0
  %97 = vmatpush1.msra.mxu0 0.0
  %98 = vmatprep.subr.mxu0 0.0
  %99 = vmatpush1.msra.mxu0 0.0
  %100 = vmatprep.subr.mxu0 0.0
  %101 = vmatpush1.msra.mxu0 0.0
  %102 = vmatprep.subr.mxu0 0.0
  %103 = vmatpush1.msra.mxu0 0.0
  %104 = vmatprep.subr.mxu0 0.0
  %105 = vmatpush1.msra.mxu0 0.0
  %106 = vmatprep.subr.mxu0 0.0
  %107 = vmatpush1.msra.mxu0 0.0
  %108 = vmatprep.subr.mxu0 0.0
  %109 = vmatpush1.msra.mxu0 0.0
  %110 = vmatprep.subr.mxu0 0.0
  %111 = vmatpush1.msra.mxu0 0.0
  %112 = vmatprep.mubr.f32.mxu0 0.0
  %113 = vmatmul.mubr.f32.gmra.mrb[0].mxu0 %v43
  %v114 = vpop.f32.mrb[0].mxu0
  %v115 = vadd.f32 %v40, %v114
  %v116 = vpop.f32.mrb[0].mxu0
  %117 = vmatprep.mubr.f32.mxu0 0.0
  %118 = vmatmul.mubr.f32.gmra.mrb[0].mxu0 %v46
  %v119 = vpop.f32.mrb[0].mxu0
  %v120 = vadd.f32 %v40, %v119
  %v121 = vpop.f32.mrb[0].mxu0
  %122 = vdwg.mxu0
  %v123 = vlaneseq
  %v124 = vshrl.u32 %v123, 7
  %v125 = vsub.s32 2, %v124
  %v126 = vrot.slane %v36, %v125
  %131 = vrot.lane.b32.xlu0 %v28, 96
  %v132 = vpop.permute.xlu0 %131
  %133 = vrot.lane.b32.xlu0 %v29, 96
  %v134 = vpop.permute.xlu0 %133
  %135 = vrot.lane.b32.xlu0 %v30, 96
  %v136 = vpop.permute.xlu0 %135
  %137 = vrot.lane.b32.xlu0 %v31, 96
  %v138 = vpop.permute.xlu0 %137
  %v144 = vsel %vm41, %v14, 0
  %v147 = vsel %vm41, %v15, 0
  %149 = vmatprep.subr.mxu0 0.0
  %150 = vmatpush1.msra.mxu0 %v132
  %151 = vmatprep.subr.mxu0 0.0
  %152 = vmatpush1.msra.mxu0 %v134
  %153 = vmatprep.subr.mxu0 0.0
  %154 = vmatpush1.msra.mxu0 %v136
  %155 = vmatprep.subr.mxu0 0.0
  %156 = vmatpush1.msra.mxu0 %v138
  %157 = vmatprep.subr.mxu0 0.0
  %158 = vmatpush1.msra.mxu0 0.0
  %159 = vmatprep.subr.mxu0 0.0
  %160 = vmatpush1.msra.mxu0 0.0
  %161 = vmatprep.subr.mxu0 0.0
  %162 = vmatpush1.msra.mxu0 0.0
  %163 = vmatprep.subr.mxu0 0.0
  %164 = vmatpush1.msra.mxu0 0.0
  %165 = vmatprep.subr.mxu0 0.0
  %166 = vmatpush1.msra.mxu0 0.0
  %167 = vmatprep.subr.mxu0 0.0
  %168 = vmatpush1.msra.mxu0 0.0
  %169 = vmatprep.subr.mxu0 0.0
  %170 = vmatpush1.msra.mxu0 0.0
  %171 = vmatprep.subr.mxu0 0.0
  %172 = vmatpush1.msra.mxu0 0.0
  %173 = vmatprep.subr.mxu0 0.0
  %174 = vmatpush1.msra.mxu0 0.0
  %175 = vmatprep.subr.mxu0 0.0
  %176 = vmatpush1.msra.mxu0 0.0
  %177 = vmatprep.subr.mxu0 0.0
  %178 = vmatpush1.msra.mxu0 0.0
  %179 = vmatprep.subr.mxu0 0.0
  %180 = vmatpush1.msra.mxu0 0.0
  %181 = vmatprep.subr.mxu0 0.0
  %182 = vmatpush1.msra.mxu0 0.0
  %183 = vmatprep.subr.mxu0 0.0
  %184 = vmatpush1.msra.mxu0 0.0
  %185 = vmatprep.subr.mxu0 0.0
  %186 = vmatpush1.msra.mxu0 0.0
  %187 = vmatprep.subr.mxu0 0.0
  %188 = vmatpush1.msra.mxu0 0.0
  %189 = vmatprep.subr.mxu0 0.0
  %190 = vmatpush1.msra.mxu0 0.0
  %191 = vmatprep.subr.mxu0 0.0
  %192 = vmatpush1.msra.mxu0 0.0
  %193 = vmatprep.subr.mxu0 0.0
  %194 = vmatpush1.msra.mxu0 0.0
  %195 = vmatprep.subr.mxu0 0.0
  %196 = vmatpush1.msra.mxu0 0.0
  %197 = vmatprep.subr.mxu0 0.0
  %198 = vmatpush1.msra.mxu0 0.0
  %199 = vmatprep.subr.mxu0 0.0
  %200 = vmatpush1.msra.mxu0 0.0
  %201 = vmatprep.subr.mxu0 0.0
  %202 = vmatpush1.msra.mxu0 0.0
  %203 = vmatprep.subr.mxu0 0.0
  %204 = vmatpush1.msra.mxu0 0.0
  %205 = vmatprep.subr.mxu0 0.0
  %206 = vmatpush1.msra.mxu0 0.0
  %207 = vmatprep.subr.mxu0 0.0
  %208 = vmatpush1.msra.mxu0 0.0
  %209 = vmatprep.subr.mxu0 0.0
  %210 = vmatpush1.msra.mxu0 0.0
  %211 = vmatprep.subr.mxu0 0.0
  %212 = vmatpush1.msra.mxu0 0.0
  %213 = vmatprep.mubr.f32.mxu0 0.0
  %214 = vmatmul.mubr.f32.gmra.mrb[0].mxu0 %v144
  %v215 = vpop.f32.mrb[0].mxu0
  %v216 = vadd.f32 %v126, %v215
  %v217 = vpop.f32.mrb[0].mxu0
  %218 = vmatprep.mubr.f32.mxu0 0.0
  %219 = vmatmul.mubr.f32.gmra.mrb[0].mxu0 %v147
  %v220 = vpop.f32.mrb[0].mxu0
  %v221 = vadd.f32 %v126, %v220
  %v222 = vpop.f32.mrb[0].mxu0
  %223 = vdwg.mxu0
  %225 = vrot.lane.b32.xlu0 %v115, 96
  %v226 = vpop.permute.xlu0 %225
  %vm227 = vcmask 64512
  %v228 = vsel %vm227, %v115, 0
  %v230 = vsel %vm227, %v226, 0
  %232 = vmatprep.subr.mxu0 0.0
  %233 = vmatpush1.xpose.msra.mxu0 %v230
  %234 = vmatprep.subr.mxu0 0.0
  %235 = vmatpush1.xpose.msra.mxu0 0.0
  %236 = vmatprep.subr.mxu0 0.0
  %237 = vmatpush1.xpose.msra.mxu0 0.0
  %238 = vmatprep.subr.mxu0 0.0
  %239 = vmatpush1.xpose.msra.mxu0 0.0
  %240 = vmatprep.subr.mxu0 0.0
  %241 = vmatpush1.xpose.msra.mxu0 0.0
  %242 = vmatprep.subr.mxu0 0.0
  %243 = vmatpush1.xpose.msra.mxu0 0.0
  %244 = vmatprep.subr.mxu0 0.0
  %245 = vmatpush1.xpose.msra.mxu0 0.0
  %246 = vmatprep.subr.mxu0 0.0
  %247 = vmatpush1.xpose.msra.mxu0 0.0
  %248 = vmatprep.subr.mxu0 0.0
  %249 = vmatpush1.xpose.msra.mxu0 0.0
  %250 = vmatprep.subr.mxu0 0.0
  %251 = vmatpush1.xpose.msra.mxu0 0.0
  %252 = vmatprep.subr.mxu0 0.0
  %253 = vmatpush1.xpose.msra.mxu0 0.0
  %254 = vmatprep.subr.mxu0 0.0
  %255 = vmatpush1.xpose.msra.mxu0 0.0
  %256 = vmatprep.subr.mxu0 0.0
  %257 = vmatpush1.xpose.msra.mxu0 0.0
  %258 = vmatprep.subr.mxu0 0.0
  %259 = vmatpush1.xpose.msra.mxu0 0.0
  %260 = vmatprep.subr.mxu0 0.0
  %261 = vmatpush1.xpose.msra.mxu0 0.0
  %262 = vmatprep.subr.mxu0 0.0
  %263 = vmatpush1.xpose.msra.mxu0 0.0
  %264 = vmatprep.subr.mxu0 0.0
  %265 = vmatpush1.xpose.msra.mxu0 0.0
  %266 = vmatprep.subr.mxu0 0.0
  %267 = vmatpush1.xpose.msra.mxu0 0.0
  %268 = vmatprep.subr.mxu0 0.0
  %269 = vmatpush1.xpose.msra.mxu0 0.0
  %270 = vmatprep.subr.mxu0 0.0
  %271 = vmatpush1.xpose.msra.mxu0 0.0
  %272 = vmatprep.subr.mxu0 0.0
  %273 = vmatpush1.xpose.msra.mxu0 0.0
  %274 = vmatprep.subr.mxu0 0.0
  %275 = vmatpush1.xpose.msra.mxu0 0.0
  %276 = vmatprep.subr.mxu0 0.0
  %277 = vmatpush1.xpose.msra.mxu0 0.0
  %278 = vmatprep.subr.mxu0 0.0
  %279 = vmatpush1.xpose.msra.mxu0 0.0
  %280 = vmatprep.subr.mxu0 0.0
  %281 = vmatpush1.xpose.msra.mxu0 0.0
  %282 = vmatprep.subr.mxu0 0.0
  %283 = vmatpush1.xpose.msra.mxu0 0.0
  %284 = vmatprep.subr.mxu0 0.0
  %285 = vmatpush1.xpose.msra.mxu0 0.0
  %286 = vmatprep.subr.mxu0 0.0
  %287 = vmatpush1.xpose.msra.mxu0 0.0
  %288 = vmatprep.subr.mxu0 0.0
  %289 = vmatpush1.xpose.msra.mxu0 0.0
  %290 = vmatprep.subr.mxu0 0.0
  %291 = vmatpush1.xpose.msra.mxu0 0.0
  %292 = vmatprep.subr.mxu0 0.0
  %293 = vmatpush1.xpose.msra.mxu0 0.0
  %294 = vmatprep.subr.mxu0 0.0
  %295 = vmatpush1.xpose.msra.mxu0 0.0
  %296 = vmatprep.mubr.f32.mxu0 0.0
  %297 = vmatmul.mubr.f32.gmra.mrb[0].mxu0 %v228
  %v298 = vpop.f32.mrb[0].mxu0
  %v299 = vadd.f32 0.0, %v298
  %v300 = vpop.f32.mrb[0].mxu0
  %301 = vdwg.mxu0
  %v302 = vsel %vm227, %v299, -inf
  %303 = vmax.xlane.f32.xlu0 %v302
  %v304 = vpop.xlane.xlu0 %303
  %v305 = vsub.f32 %v299, %v304
  %v306 = vmul.f32 %v305, 1.442695
  %v307 = vpow.pop %v306
  %v308 = vsel %vm227, %v307, 0.0
  %309 = vadd.xlane.f32.xlu0 %v308
  %v310 = vpop.xlane.xlu0 %309
  %v311 = vrcp.pop %v310
  %v312 = vmul.f32 %v307, %v311
  %v314 = vsel %vm227, %v312, 0
  %316 = vmatprep.subr.mxu0 0.0
  %317 = vmatpush1.msra.mxu0 %v216
  %318 = vmatprep.subr.mxu0 0.0
  %319 = vmatpush1.msra.mxu0 0.0
  %320 = vmatprep.subr.mxu0 0.0
  %321 = vmatpush1.msra.mxu0 0.0
  %322 = vmatprep.subr.mxu0 0.0
  %323 = vmatpush1.msra.mxu0 0.0
  %324 = vmatprep.subr.mxu0 0.0
  %325 = vmatpush1.msra.mxu0 0.0
  %326 = vmatprep.subr.mxu0 0.0
  %327 = vmatpush1.msra.mxu0 0.0
  %328 = vmatprep.subr.mxu0 0.0
  %329 = vmatpush1.msra.mxu0 0.0
  %330 = vmatprep.subr.mxu0 0.0
  %331 = vmatpush1.msra.mxu0 0.0
  %332 = vmatprep.subr.mxu0 0.0
  %333 = vmatpush1.msra.mxu0 0.0
  %334 = vmatprep.subr.mxu0 0.0
  %335 = vmatpush1.msra.mxu0 0.0
  %336 = vmatprep.subr.mxu0 0.0
  %337 = vmatpush1.msra.mxu0 0.0
  %338 = vmatprep.subr.mxu0 0.0
  %339 = vmatpush1.msra.mxu0 0.0
  %340 = vmatprep.subr.mxu0 0.0
  %341 = vmatpush1.msra.mxu0 0.0
  %342 = vmatprep.subr.mxu0 0.0
  %343 = vmatpush1.msra.mxu0 0.0
  %344 = vmatprep.subr.mxu0 0.0
  %345 = vmatpush1.msra.mxu0 0.0
  %346 = vmatprep.subr.mxu0 0.0
  %347 = vmatpush1.msra.mxu0 0.0
  %348 = vmatprep.subr.mxu0 0.0
  %349 = vmatpush1.msra.mxu0 0.0
  %350 = vmatprep.subr.mxu0 0.0
  %351 = vmatpush1.msra.mxu0 0.0
  %352 = vmatprep.subr.mxu0 0.0
  %353 = vmatpush1.msra.mxu0 0.0
  %354 = vmatprep.subr.mxu0 0.0
  %355 = vmatpush1.msra.mxu0 0.0
  %356 = vmatprep.subr.mxu0 0.0
  %357 = vmatpush1.msra.mxu0 0.0
  %358 = vmatprep.subr.mxu0 0.0
  %359 = vmatpush1.msra.mxu0 0.0
  %360 = vmatprep.subr.mxu0 0.0
  %361 = vmatpush1.msra.mxu0 0.0
  %362 = vmatprep.subr.mxu0 0.0
  %363 = vmatpush1.msra.mxu0 0.0
  %364 = vmatprep.subr.mxu0 0.0
  %365 = vmatpush1.msra.mxu0 0.0
  %366 = vmatprep.subr.mxu0 0.0
  %367 = vmatpush1.msra.mxu0 0.0
  %368 = vmatprep.subr.mxu0 0.0
  %369 = vmatpush1.msra.mxu0 0.0
  %370 = vmatprep.subr.mxu0 0.0
  %371 = vmatpush1.msra.mxu0 0.0
  %372 = vmatprep.subr.mxu0 0.0
  %373 = vmatpush1.msra.mxu0 0.0
  %374 = vmatprep.subr.mxu0 0.0
  %375 = vmatpush1.msra.mxu0 0.0
  %376 = vmatprep.subr.mxu0 0.0
  %377 = vmatpush1.msra.mxu0 0.0
  %378 = vmatprep.subr.mxu0 0.0
  %379 = vmatpush1.msra.mxu0 0.0
  %380 = vmatprep.mubr.f32.mxu0 0.0
  %381 = vmatmul.mubr.f32.gmra.mrb[0].mxu0 %v314
  %v382 = vpop.f32.mrb[0].mxu0
  %v383 = vadd.f32 0.0, %v382
  %v384 = vpop.f32.mrb[0].mxu0
  %385 = vdwg.mxu0
  %386 = vrot.lane.b32.xlu0 %v115, 120
  %v387 = vpop.permute.xlu0 %386
  %388 = vrot.lane.b32.xlu0 %v115, 88
  %v389 = vpop.permute.xlu0 %388
  %v390 = vsel %vm227, %v387, 0
  %v392 = vsel %vm227, %v389, 0
  %394 = vmatprep.subr.mxu0 0.0
  %395 = vmatpush1.xpose.msra.mxu0 %v392
  %396 = vmatprep.subr.mxu0 0.0
  %397 = vmatpush1.xpose.msra.mxu0 0.0
  %398 = vmatprep.subr.mxu0 0.0
  %399 = vmatpush1.xpose.msra.mxu0 0.0
  %400 = vmatprep.subr.mxu0 0.0
  %401 = vmatpush1.xpose.msra.mxu0 0.0
  %402 = vmatprep.subr.mxu0 0.0
  %403 = vmatpush1.xpose.msra.mxu0 0.0
  %404 = vmatprep.subr.mxu0 0.0
  %405 = vmatpush1.xpose.msra.mxu0 0.0
  %406 = vmatprep.subr.mxu0 0.0
  %407 = vmatpush1.xpose.msra.mxu0 0.0
  %408 = vmatprep.subr.mxu0 0.0
  %409 = vmatpush1.xpose.msra.mxu0 0.0
  %410 = vmatprep.subr.mxu0 0.0
  %411 = vmatpush1.xpose.msra.mxu0 0.0
  %412 = vmatprep.subr.mxu0 0.0
  %413 = vmatpush1.xpose.msra.mxu0 0.0
  %414 = vmatprep.subr.mxu0 0.0
  %415 = vmatpush1.xpose.msra.mxu0 0.0
  %416 = vmatprep.subr.mxu0 0.0
  %417 = vmatpush1.xpose.msra.mxu0 0.0
  %418 = vmatprep.subr.mxu0 0.0
  %419 = vmatpush1.xpose.msra.mxu0 0.0
  %420 = vmatprep.subr.mxu0 0.0
  %421 = vmatpush1.xpose.msra.mxu0 0.0
  %422 = vmatprep.subr.mxu0 0.0
  %423 = vmatpush1.xpose.msra.mxu0 0.0
  %424 = vmatprep.subr.mxu0 0.0
  %425 = vmatpush1.xpose.msra.mxu0 0.0
  %426 = vmatprep.subr.mxu0 0.0
  %427 = vmatpush1.xpose.msra.mxu0 0.0
  %428 = vmatprep.subr.mxu0 0.0
  %429 = vmatpush1.xpose.msra.mxu0 0.0
  %430 = vmatprep.subr.mxu0 0.0
  %431 = vmatpush1.xpose.msra.mxu0 0.0
  %432 = vmatprep.subr.mxu0 0.0
  %433 = vmatpush1.xpose.msra.mxu0 0.0
  %434 = vmatprep.subr.mxu0 0.0
  %435 = vmatpush1.xpose.msra.mxu0 0.0
  %436 = vmatprep.subr.mxu0 0.0
  %437 = vmatpush1.xpose.msra.mxu0 0.0
  %438 = vmatprep.subr.mxu0 0.0
  %439 = vmatpush1.xpose.msra.mxu0 0.0
  %440 = vmatprep.subr.mxu0 0.0
  %441 = vmatpush1.xpose.msra.mxu0 0.0
  %442 = vmatprep.subr.mxu0 0.0
  %443 = vmatpush1.xpose.msra.mxu0 0.0
  %444 = vmatprep.subr.mxu0 0.0
  %445 = vmatpush1.xpose.msra.mxu0 0.0
  %446 = vmatprep.subr.mxu0 0.0
  %447 = vmatpush1.xpose.msra.mxu0 0.0
  %448 = vmatprep.subr.mxu0 0.0
  %449 = vmatpush1.xpose.msra.mxu0 0.0
  %450 = vmatprep.subr.mxu0 0.0
  %451 = vmatpush1.xpose.msra.mxu0 0.0
  %452 = vmatprep.subr.mxu0 0.0
  %453 = vmatpush1.xpose.msra.mxu0 0.0
  %454 = vmatprep.subr.mxu0 0.0
  %455 = vmatpush1.xpose.msra.mxu0 0.0
  %456 = vmatprep.subr.mxu0 0.0
  %457 = vmatpush1.xpose.msra.mxu0 0.0
  %458 = vmatprep.mubr.f32.mxu0 0.0
  %459 = vmatmul.mubr.f32.gmra.mrb[0].mxu0 %v390
  %v460 = vpop.f32.mrb[0].mxu0
  %v461 = vadd.f32 0.0, %v460
  %v462 = vpop.f32.mrb[0].mxu0
  %463 = vdwg.mxu0
  %v464 = vsel %vm227, %v461, -inf
  %465 = vmax.xlane.f32.xlu0 %v464
  %v466 = vpop.xlane.xlu0 %465
  %v467 = vsub.f32 %v461, %v466
  %v468 = vmul.f32 %v467, 1.442695
  %v469 = vpow.pop %v468
  %v470 = vsel %vm227, %v469, 0.0
  %471 = vadd.xlane.f32.xlu0 %v470
  %v472 = vpop.xlane.xlu0 %471
  %v473 = vrcp.pop %v472
  %v474 = vmul.f32 %v469, %v473
  %476 = vrot.lane.b32.xlu0 %v216, 120
  %v477 = vpop.permute.xlu0 %476
  %v480 = vsel %vm227, %v474, 0
  %482 = vmatprep.subr.mxu0 0.0
  %483 = vmatpush1.msra.mxu0 %v477
  %484 = vmatprep.subr.mxu0 0.0
  %485 = vmatpush1.msra.mxu0 0.0
  %486 = vmatprep.subr.mxu0 0.0
  %487 = vmatpush1.msra.mxu0 0.0
  %488 = vmatprep.subr.mxu0 0.0
  %489 = vmatpush1.msra.mxu0 0.0
  %490 = vmatprep.subr.mxu0 0.0
  %491 = vmatpush1.msra.mxu0 0.0
  %492 = vmatprep.subr.mxu0 0.0
  %493 = vmatpush1.msra.mxu0 0.0
  %494 = vmatprep.subr.mxu0 0.0
  %495 = vmatpush1.msra.mxu0 0.0
  %496 = vmatprep.subr.mxu0 0.0
  %497 = vmatpush1.msra.mxu0 0.0
  %498 = vmatprep.subr.mxu0 0.0
  %499 = vmatpush1.msra.mxu0 0.0
  %500 = vmatprep.subr.mxu0 0.0
  %501 = vmatpush1.msra.mxu0 0.0
  %502 = vmatprep.subr.mxu0 0.0
  %503 = vmatpush1.msra.mxu0 0.0
  %504 = vmatprep.subr.mxu0 0.0
  %505 = vmatpush1.msra.mxu0 0.0
  %506 = vmatprep.subr.mxu0 0.0
  %507 = vmatpush1.msra.mxu0 0.0
  %508 = vmatprep.subr.mxu0 0.0
  %509 = vmatpush1.msra.mxu0 0.0
  %510 = vmatprep.subr.mxu0 0.0
  %511 = vmatpush1.msra.mxu0 0.0
  %512 = vmatprep.subr.mxu0 0.0
  %513 = vmatpush1.msra.mxu0 0.0
  %514 = vmatprep.subr.mxu0 0.0
  %515 = vmatpush1.msra.mxu0 0.0
  %516 = vmatprep.subr.mxu0 0.0
  %517 = vmatpush1.msra.mxu0 0.0
  %518 = vmatprep.subr.mxu0 0.0
  %519 = vmatpush1.msra.mxu0 0.0
  %520 = vmatprep.subr.mxu0 0.0
  %521 = vmatpush1.msra.mxu0 0.0
  %522 = vmatprep.subr.mxu0 0.0
  %523 = vmatpush1.msra.mxu0 0.0
  %524 = vmatprep.subr.mxu0 0.0
  %525 = vmatpush1.msra.mxu0 0.0
  %526 = vmatprep.subr.mxu0 0.0
  %527 = vmatpush1.msra.mxu0 0.0
  %528 = vmatprep.subr.mxu0 0.0
  %529 = vmatpush1.msra.mxu0 0.0
  %530 = vmatprep.subr.mxu0 0.0
  %531 = vmatpush1.msra.mxu0 0.0
  %532 = vmatprep.subr.mxu0 0.0
  %533 = vmatpush1.msra.mxu0 0.0
  %534 = vmatprep.subr.mxu0 0.0
  %535 = vmatpush1.msra.mxu0 0.0
  %536 = vmatprep.subr.mxu0 0.0
  %537 = vmatpush1.msra.mxu0 0.0
  %538 = vmatprep.subr.mxu0 0.0
  %539 = vmatpush1.msra.mxu0 0.0
  %540 = vmatprep.subr.mxu0 0.0
  %541 = vmatpush1.msra.mxu0 0.0
  %542 = vmatprep.subr.mxu0 0.0
  %543 = vmatpush1.msra.mxu0 0.0
  %544 = vmatprep.subr.mxu0 0.0
  %545 = vmatpush1.msra.mxu0 0.0
  %546 = vmatprep.mubr.f32.mxu0 0.0
  %547 = vmatmul.mubr.f32.gmra.mrb[0].mxu0 %v480
  %v548 = vpop.f32.mrb[0].mxu0
  %v549 = vadd.f32 0.0, %v548
  %v550 = vpop.f32.mrb[0].mxu0
  %551 = vdwg.mxu0
  %552 = vrot.lane.b32.xlu0 %v115, 112
  %v553 = vpop.permute.xlu0 %552
  %554 = vrot.lane.b32.xlu0 %v115, 80
  %v555 = vpop.permute.xlu0 %554
  %v556 = vsel %vm227, %v553, 0
  %v558 = vsel %vm227, %v555, 0
  %560 = vmatprep.subr.mxu0 0.0
  %561 = vmatpush1.xpose.msra.mxu0 %v558
  %562 = vmatprep.subr.mxu0 0.0
  %563 = vmatpush1.xpose.msra.mxu0 0.0
  %564 = vmatprep.subr.mxu0 0.0
  %565 = vmatpush1.xpose.msra.mxu0 0.0
  %566 = vmatprep.subr.mxu0 0.0
  %567 = vmatpush1.xpose.msra.mxu0 0.0
  %568 = vmatprep.subr.mxu0 0.0
  %569 = vmatpush1.xpose.msra.mxu0 0.0
  %570 = vmatprep.subr.mxu0 0.0
  %571 = vmatpush1.xpose.msra.mxu0 0.0
  %572 = vmatprep.subr.mxu0 0.0
  %573 = vmatpush1.xpose.msra.mxu0 0.0
  %574 = vmatprep.subr.mxu0 0.0
  %575 = vmatpush1.xpose.msra.mxu0 0.0
  %576 = vmatprep.subr.mxu0 0.0
  %577 = vmatpush1.xpose.msra.mxu0 0.0
  %578 = vmatprep.subr.mxu0 0.0
  %579 = vmatpush1.xpose.msra.mxu0 0.0
  %580 = vmatprep.subr.mxu0 0.0
  %581 = vmatpush1.xpose.msra.mxu0 0.0
  %582 = vmatprep.subr.mxu0 0.0
  %583 = vmatpush1.xpose.msra.mxu0 0.0
  %584 = vmatprep.subr.mxu0 0.0
  %585 = vmatpush1.xpose.msra.mxu0 0.0
  %586 = vmatprep.subr.mxu0 0.0
  %587 = vmatpush1.xpose.msra.mxu0 0.0
  %588 = vmatprep.subr.mxu0 0.0
  %589 = vmatpush1.xpose.msra.mxu0 0.0
  %590 = vmatprep.subr.mxu0 0.0
  %591 = vmatpush1.xpose.msra.mxu0 0.0
  %592 = vmatprep.subr.mxu0 0.0
  %593 = vmatpush1.xpose.msra.mxu0 0.0
  %594 = vmatprep.subr.mxu0 0.0
  %595 = vmatpush1.xpose.msra.mxu0 0.0
  %596 = vmatprep.subr.mxu0 0.0
  %597 = vmatpush1.xpose.msra.mxu0 0.0
  %598 = vmatprep.subr.mxu0 0.0
  %599 = vmatpush1.xpose.msra.mxu0 0.0
  %600 = vmatprep.subr.mxu0 0.0
  %601 = vmatpush1.xpose.msra.mxu0 0.0
  %602 = vmatprep.subr.mxu0 0.0
  %603 = vmatpush1.xpose.msra.mxu0 0.0
  %604 = vmatprep.subr.mxu0 0.0
  %605 = vmatpush1.xpose.msra.mxu0 0.0
  %606 = vmatprep.subr.mxu0 0.0
  %607 = vmatpush1.xpose.msra.mxu0 0.0
  %608 = vmatprep.subr.mxu0 0.0
  %609 = vmatpush1.xpose.msra.mxu0 0.0
  %610 = vmatprep.subr.mxu0 0.0
  %611 = vmatpush1.xpose.msra.mxu0 0.0
  %612 = vmatprep.subr.mxu0 0.0
  %613 = vmatpush1.xpose.msra.mxu0 0.0
  %614 = vmatprep.subr.mxu0 0.0
  %615 = vmatpush1.xpose.msra.mxu0 0.0
  %616 = vmatprep.subr.mxu0 0.0
  %617 = vmatpush1.xpose.msra.mxu0 0.0
  %618 = vmatprep.subr.mxu0 0.0
  %619 = vmatpush1.xpose.msra.mxu0 0.0
  %620 = vmatprep.subr.mxu0 0.0
  %621 = vmatpush1.xpose.msra.mxu0 0.0
  %622 = vmatprep.subr.mxu0 0.0
  %623 = vmatpush1.xpose.msra.mxu0 0.0
  %624 = vmatprep.mubr.f32.mxu0 0.0
  %625 = vmatmul.mubr.f32.gmra.mrb[0].mxu0 %v556
  %v626 = vpop.f32.mrb[0].mxu0
  %v627 = vadd.f32 0.0, %v626
  %v628 = vpop.f32.mrb[0].mxu0
  %629 = vdwg.mxu0
  %v630 = vsel %vm227, %v627, -inf
  %631 = vmax.xlane.f32.xlu0 %v630
  %v632 = vpop.xlane.xlu0 %631
  %v633 = vsub.f32 %v627, %v632
  %v634 = vmul.f32 %v633, 1.442695
  %v635 = vpow.pop %v634
  %v636 = vsel %vm227, %v635, 0.0
  %637 = vadd.xlane.f32.xlu0 %v636
  %v638 = vpop.xlane.xlu0 %637
  %v639 = vrcp.pop %v638
  %v640 = vmul.f32 %v635, %v639
  %641 = vrot.lane.b32.xlu0 %v216, 112
  %v642 = vpop.permute.xlu0 %641
  %v645 = vsel %vm227, %v640, 0
  %647 = vmatprep.subr.mxu0 0.0
  %648 = vmatpush1.msra.mxu0 %v642
  %649 = vmatprep.subr.mxu0 0.0
  %650 = vmatpush1.msra.mxu0 0.0
  %651 = vmatprep.subr.mxu0 0.0
  %652 = vmatpush1.msra.mxu0 0.0
  %653 = vmatprep.subr.mxu0 0.0
  %654 = vmatpush1.msra.mxu0 0.0
  %655 = vmatprep.subr.mxu0 0.0
  %656 = vmatpush1.msra.mxu0 0.0
  %657 = vmatprep.subr.mxu0 0.0
  %658 = vmatpush1.msra.mxu0 0.0
  %659 = vmatprep.subr.mxu0 0.0
  %660 = vmatpush1.msra.mxu0 0.0
  %661 = vmatprep.subr.mxu0 0.0
  %662 = vmatpush1.msra.mxu0 0.0
  %663 = vmatprep.subr.mxu0 0.0
  %664 = vmatpush1.msra.mxu0 0.0
  %665 = vmatprep.subr.mxu0 0.0
  %666 = vmatpush1.msra.mxu0 0.0
  %667 = vmatprep.subr.mxu0 0.0
  %668 = vmatpush1.msra.mxu0 0.0
  %669 = vmatprep.subr.mxu0 0.0
  %670 = vmatpush1.msra.mxu0 0.0
  %671 = vmatprep.subr.mxu0 0.0
  %672 = vmatpush1.msra.mxu0 0.0
  %673 = vmatprep.subr.mxu0 0.0
  %674 = vmatpush1.msra.mxu0 0.0
  %675 = vmatprep.subr.mxu0 0.0
  %676 = vmatpush1.msra.mxu0 0.0
  %677 = vmatprep.subr.mxu0 0.0
  %678 = vmatpush1.msra.mxu0 0.0
  %679 = vmatprep.subr.mxu0 0.0
  %680 = vmatpush1.msra.mxu0 0.0
  %681 = vmatprep.subr.mxu0 0.0
  %682 = vmatpush1.msra.mxu0 0.0
  %683 = vmatprep.subr.mxu0 0.0
  %684 = vmatpush1.msra.mxu0 0.0
  %685 = vmatprep.subr.mxu0 0.0
  %686 = vmatpush1.msra.mxu0 0.0
  %687 = vmatprep.subr.mxu0 0.0
  %688 = vmatpush1.msra.mxu0 0.0
  %689 = vmatprep.subr.mxu0 0.0
  %690 = vmatpush1.msra.mxu0 0.0
  %691 = vmatprep.subr.mxu0 0.0
  %692 = vmatpush1.msra.mxu0 0.0
  %693 = vmatprep.subr.mxu0 0.0
  %694 = vmatpush1.msra.mxu0 0.0
  %695 = vmatprep.subr.mxu0 0.0
  %696 = vmatpush1.msra.mxu0 0.0
  %697 = vmatprep.subr.mxu0 0.0
  %698 = vmatpush1.msra.mxu0 0.0
  %699 = vmatprep.subr.mxu0 0.0
  %700 = vmatpush1.msra.mxu0 0.0
  %701 = vmatprep.subr.mxu0 0.0
  %702 = vmatpush1.msra.mxu0 0.0
  %703 = vmatprep.subr.mxu0 0.0
  %704 = vmatpush1.msra.mxu0 0.0
  %705 = vmatprep.subr.mxu0 0.0
  %706 = vmatpush1.msra.mxu0 0.0
  %707 = vmatprep.subr.mxu0 0.0
  %708 = vmatpush1.msra.mxu0 0.0
  %709 = vmatprep.subr.mxu0 0.0
  %710 = vmatpush1.msra.mxu0 0.0
  %711 = vmatprep.mubr.f32.mxu0 0.0
  %712 = vmatmul.mubr.f32.gmra.mrb[0].mxu0 %v645
  %v713 = vpop.f32.mrb[0].mxu0
  %v714 = vadd.f32 0.0, %v713
  %v715 = vpop.f32.mrb[0].mxu0
  %716 = vdwg.mxu0
  %717 = vrot.lane.b32.xlu0 %v115, 104
  %v718 = vpop.permute.xlu0 %717
  %719 = vrot.lane.b32.xlu0 %v115, 72
  %v720 = vpop.permute.xlu0 %719
  %v721 = vsel %vm227, %v718, 0
  %v723 = vsel %vm227, %v720, 0
  %725 = vmatprep.subr.mxu0 0.0
  %726 = vmatpush1.xpose.msra.mxu0 %v723
  %727 = vmatprep.subr.mxu0 0.0
  %728 = vmatpush1.xpose.msra.mxu0 0.0
  %729 = vmatprep.subr.mxu0 0.0
  %730 = vmatpush1.xpose.msra.mxu0 0.0
  %731 = vmatprep.subr.mxu0 0.0
  %732 = vmatpush1.xpose.msra.mxu0 0.0
  %733 = vmatprep.subr.mxu0 0.0
  %734 = vmatpush1.xpose.msra.mxu0 0.0
  %735 = vmatprep.subr.mxu0 0.0
  %736 = vmatpush1.xpose.msra.mxu0 0.0
  %737 = vmatprep.subr.mxu0 0.0
  %738 = vmatpush1.xpose.msra.mxu0 0.0
  %739 = vmatprep.subr.mxu0 0.0
  %740 = vmatpush1.xpose.msra.mxu0 0.0
  %741 = vmatprep.subr.mxu0 0.0
  %742 = vmatpush1.xpose.msra.mxu0 0.0
  %743 = vmatprep.subr.mxu0 0.0
  %744 = vmatpush1.xpose.msra.mxu0 0.0
  %745 = vmatprep.subr.mxu0 0.0
  %746 = vmatpush1.xpose.msra.mxu0 0.0
  %747 = vmatprep.subr.mxu0 0.0
  %748 = vmatpush1.xpose.msra.mxu0 0.0
  %749 = vmatprep.subr.mxu0 0.0
  %750 = vmatpush1.xpose.msra.mxu0 0.0
  %751 = vmatprep.subr.mxu0 0.0
  %752 = vmatpush1.xpose.msra.mxu0 0.0
  %753 = vmatprep.subr.mxu0 0.0
  %754 = vmatpush1.xpose.msra.mxu0 0.0
  %755 = vmatprep.subr.mxu0 0.0
  %756 = vmatpush1.xpose.msra.mxu0 0.0
  %757 = vmatprep.subr.mxu0 0.0
  %758 = vmatpush1.xpose.msra.mxu0 0.0
  %759 = vmatprep.subr.mxu0 0.0
  %760 = vmatpush1.xpose.msra.mxu0 0.0
  %761 = vmatprep.subr.mxu0 0.0
  %762 = vmatpush1.xpose.msra.mxu0 0.0
  %763 = vmatprep.subr.mxu0 0.0
  %764 = vmatpush1.xpose.msra.mxu0 0.0
  %765 = vmatprep.subr.mxu0 0.0
  %766 = vmatpush1.xpose.msra.mxu0 0.0
  %767 = vmatprep.subr.mxu0 0.0
  %768 = vmatpush1.xpose.msra.mxu0 0.0
  %769 = vmatprep.subr.mxu0 0.0
  %770 = vmatpush1.xpose.msra.mxu0 0.0
  %771 = vmatprep.subr.mxu0 0.0
  %772 = vmatpush1.xpose.msra.mxu0 0.0
  %773 = vmatprep.subr.mxu0 0.0
  %774 = vmatpush1.xpose.msra.mxu0 0.0
  %775 = vmatprep.subr.mxu0 0.0
  %776 = vmatpush1.xpose.msra.mxu0 0.0
  %777 = vmatprep.subr.mxu0 0.0
  %778 = vmatpush1.xpose.msra.mxu0 0.0
  %779 = vmatprep.subr.mxu0 0.0
  %780 = vmatpush1.xpose.msra.mxu0 0.0
  %781 = vmatprep.subr.mxu0 0.0
  %782 = vmatpush1.xpose.msra.mxu0 0.0
  %783 = vmatprep.subr.mxu0 0.0
  %784 = vmatpush1.xpose.msra.mxu0 0.0
  %785 = vmatprep.subr.mxu0 0.0
  %786 = vmatpush1.xpose.msra.mxu0 0.0
  %787 = vmatprep.subr.mxu0 0.0
  %788 = vmatpush1.xpose.msra.mxu0 0.0
  %789 = vmatprep.mubr.f32.mxu0 0.0
  %790 = vmatmul.mubr.f32.gmra.mrb[0].mxu0 %v721
  %v791 = vpop.f32.mrb[0].mxu0
  %v792 = vadd.f32 0.0, %v791
  %v793 = vpop.f32.mrb[0].mxu0
  %794 = vdwg.mxu0
  %v795 = vsel %vm227, %v792, -inf
  %796 = vmax.xlane.f32.xlu0 %v795
  %v797 = vpop.xlane.xlu0 %796
  %v798 = vsub.f32 %v792, %v797
  %v799 = vmul.f32 %v798, 1.442695
  %v800 = vpow.pop %v799
  %v801 = vsel %vm227, %v800, 0.0
  %802 = vadd.xlane.f32.xlu0 %v801
  %v803 = vpop.xlane.xlu0 %802
  %v804 = vrcp.pop %v803
  %v805 = vmul.f32 %v800, %v804
  %806 = vrot.lane.b32.xlu0 %v216, 104
  %v807 = vpop.permute.xlu0 %806
  %v810 = vsel %vm227, %v805, 0
  %812 = vmatprep.subr.mxu0 0.0
  %813 = vmatpush1.msra.mxu0 %v807
  %814 = vmatprep.subr.mxu0 0.0
  %815 = vmatpush1.msra.mxu0 0.0
  %816 = vmatprep.subr.mxu0 0.0
  %817 = vmatpush1.msra.mxu0 0.0
  %818 = vmatprep.subr.mxu0 0.0
  %819 = vmatpush1.msra.mxu0 0.0
  %820 = vmatprep.subr.mxu0 0.0
  %821 = vmatpush1.msra.mxu0 0.0
  %822 = vmatprep.subr.mxu0 0.0
  %823 = vmatpush1.msra.mxu0 0.0
  %824 = vmatprep.subr.mxu0 0.0
  %825 = vmatpush1.msra.mxu0 0.0
  %826 = vmatprep.subr.mxu0 0.0
  %827 = vmatpush1.msra.mxu0 0.0
  %828 = vmatprep.subr.mxu0 0.0
  %829 = vmatpush1.msra.mxu0 0.0
  %830 = vmatprep.subr.mxu0 0.0
  %831 = vmatpush1.msra.mxu0 0.0
  %832 = vmatprep.subr.mxu0 0.0
  %833 = vmatpush1.msra.mxu0 0.0
  %834 = vmatprep.subr.mxu0 0.0
  %835 = vmatpush1.msra.mxu0 0.0
  %836 = vmatprep.subr.mxu0 0.0
  %837 = vmatpush1.msra.mxu0 0.0
  %838 = vmatprep.subr.mxu0 0.0
  %839 = vmatpush1.msra.mxu0 0.0
  %840 = vmatprep.subr.mxu0 0.0
  %841 = vmatpush1.msra.mxu0 0.0
  %842 = vmatprep.subr.mxu0 0.0
  %843 = vmatpush1.msra.mxu0 0.0
  %844 = vmatprep.subr.mxu0 0.0
  %845 = vmatpush1.msra.mxu0 0.0
  %846 = vmatprep.subr.mxu0 0.0
  %847 = vmatpush1.msra.mxu0 0.0
  %848 = vmatprep.subr.mxu0 0.0
  %849 = vmatpush1.msra.mxu0 0.0
  %850 = vmatprep.subr.mxu0 0.0
  %851 = vmatpush1.msra.mxu0 0.0
  %852 = vmatprep.subr.mxu0 0.0
  %853 = vmatpush1.msra.mxu0 0.0
  %854 = vmatprep.subr.mxu0 0.0
  %855 = vmatpush1.msra.mxu0 0.0
  %856 = vmatprep.subr.mxu0 0.0
  %857 = vmatpush1.msra.mxu0 0.0
  %858 = vmatprep.subr.mxu0 0.0
  %859 = vmatpush1.msra.mxu0 0.0
  %860 = vmatprep.subr.mxu0 0.0
  %861 = vmatpush1.msra.mxu0 0.0
  %862 = vmatprep.subr.mxu0 0.0
  %863 = vmatpush1.msra.mxu0 0.0
  %864 = vmatprep.subr.mxu0 0.0
  %865 = vmatpush1.msra.mxu0 0.0
  %866 = vmatprep.subr.mxu0 0.0
  %867 = vmatpush1.msra.mxu0 0.0
  %868 = vmatprep.subr.mxu0 0.0
  %869 = vmatpush1.msra.mxu0 0.0
  %870 = vmatprep.subr.mxu0 0.0
  %871 = vmatpush1.msra.mxu0 0.0
  %872 = vmatprep.subr.mxu0 0.0
  %873 = vmatpush1.msra.mxu0 0.0
  %874 = vmatprep.subr.mxu0 0.0
  %875 = vmatpush1.msra.mxu0 0.0
  %876 = vmatprep.mubr.f32.mxu0 0.0
  %877 = vmatmul.mubr.f32.gmra.mrb[0].mxu0 %v810
  %v878 = vpop.f32.mrb[0].mxu0
  %v879 = vadd.f32 0.0, %v878
  %v880 = vpop.f32.mrb[0].mxu0
  %881 = vdwg.mxu0
  %883 = vrot.lane.b32.xlu0 %v549, 8
  %v884 = vpop.permute.xlu0 %883
  %887 = vrot.lane.b32.xlu0 %v714, 16
  %v888 = vpop.permute.xlu0 %887
  %891 = vrot.lane.b32.xlu0 %v879, 24
  %v892 = vpop.permute.xlu0 %891
  %v894 = vsel %vm227, %v383, %v884
  %vm895 = vcmask 130048
  %v896 = vsel %vm895, %v894, %v888
  %vm897 = vcmask 195584
  %v898 = vsel %vm897, %v896, %v892
  %900 = vrot.lane.b32.xlu0 %v120, 96
  %v901 = vpop.permute.xlu0 %900
  %v902 = vsel %vm227, %v120, 0
  %v904 = vsel %vm227, %v901, 0
  %906 = vmatprep.subr.mxu0 0.0
  %907 = vmatpush1.xpose.msra.mxu0 %v904
  %908 = vmatprep.subr.mxu0 0.0
  %909 = vmatpush1.xpose.msra.mxu0 0.0
  %910 = vmatprep.subr.mxu0 0.0
  %911 = vmatpush1.xpose.msra.mxu0 0.0
  %912 = vmatprep.subr.mxu0 0.0
  %913 = vmatpush1.xpose.msra.mxu0 0.0
  %914 = vmatprep.subr.mxu0 0.0
  %915 = vmatpush1.xpose.msra.mxu0 0.0
  %916 = vmatprep.subr.mxu0 0.0
  %917 = vmatpush1.xpose.msra.mxu0 0.0
  %918 = vmatprep.subr.mxu0 0.0
  %919 = vmatpush1.xpose.msra.mxu0 0.0
  %920 = vmatprep.subr.mxu0 0.0
  %921 = vmatpush1.xpose.msra.mxu0 0.0
  %922 = vmatprep.subr.mxu0 0.0
  %923 = vmatpush1.xpose.msra.mxu0 0.0
  %924 = vmatprep.subr.mxu0 0.0
  %925 = vmatpush1.xpose.msra.mxu0 0.0
  %926 = vmatprep.subr.mxu0 0.0
  %927 = vmatpush1.xpose.msra.mxu0 0.0
  %928 = vmatprep.subr.mxu0 0.0
  %929 = vmatpush1.xpose.msra.mxu0 0.0
  %930 = vmatprep.subr.mxu0 0.0
  %931 = vmatpush1.xpose.msra.mxu0 0.0
  %932 = vmatprep.subr.mxu0 0.0
  %933 = vmatpush1.xpose.msra.mxu0 0.0
  %934 = vmatprep.subr.mxu0 0.0
  %935 = vmatpush1.xpose.msra.mxu0 0.0
  %936 = vmatprep.subr.mxu0 0.0
  %937 = vmatpush1.xpose.msra.mxu0 0.0
  %938 = vmatprep.subr.mxu0 0.0
  %939 = vmatpush1.xpose.msra.mxu0 0.0
  %940 = vmatprep.subr.mxu0 0.0
  %941 = vmatpush1.xpose.msra.mxu0 0.0
  %942 = vmatprep.subr.mxu0 0.0
  %943 = vmatpush1.xpose.msra.mxu0 0.0
  %944 = vmatprep.subr.mxu0 0.0
  %945 = vmatpush1.xpose.msra.mxu0 0.0
  %946 = vmatprep.subr.mxu0 0.0
  %947 = vmatpush1.xpose.msra.mxu0 0.0
  %948 = vmatprep.subr.mxu0 0.0
  %949 = vmatpush1.xpose.msra.mxu0 0.0
  %950 = vmatprep.subr.mxu0 0.0
  %951 = vmatpush1.xpose.msra.mxu0 0.0
  %952 = vmatprep.subr.mxu0 0.0
  %953 = vmatpush1.xpose.msra.mxu0 0.0
  %954 = vmatprep.subr.mxu0 0.0
  %955 = vmatpush1.xpose.msra.mxu0 0.0
  %956 = vmatprep.subr.mxu0 0.0
  %957 = vmatpush1.xpose.msra.mxu0 0.0
  %958 = vmatprep.subr.mxu0 0.0
  %959 = vmatpush1.xpose.msra.mxu0 0.0
  %960 = vmatprep.subr.mxu0 0.0
  %961 = vmatpush1.xpose.msra.mxu0 0.0
  %962 = vmatprep.subr.mxu0 0.0
  %963 = vmatpush1.xpose.msra.mxu0 0.0
  %964 = vmatprep.subr.mxu0 0.0
  %965 = vmatpush1.xpose.msra.mxu0 0.0
  %966 = vmatprep.subr.mxu0 0.0
  %967 = vmatpush1.xpose.msra.mxu0 0.0
  %968 = vmatprep.subr.mxu0 0.0
  %969 = vmatpush1.xpose.msra.mxu0 0.0
  %970 = vmatprep.mubr.f32.mxu0 0.0
  %971 = vmatmul.mubr.f32.gmra.mrb[0].mxu0 %v902
  %v972 = vpop.f32.mrb[0].mxu0
  %v973 = vadd.f32 0.0, %v972
  %v974 = vpop.f32.mrb[0].mxu0
  %975 = vdwg.mxu0
  %v976 = vsel %vm227, %v973, -inf
  %977 = vmax.xlane.f32.xlu0 %v976
  %v978 = vpop.xlane.xlu0 %977
  %v979 = vsub.f32 %v973, %v978
  %v980 = vmul.f32 %v979, 1.442695
  %v981 = vpow.pop %v980
  %v982 = vsel %vm227, %v981, 0.0
  %983 = vadd.xlane.f32.xlu0 %v982
  %v984 = vpop.xlane.xlu0 %983
  %v985 = vrcp.pop %v984
  %v986 = vmul.f32 %v981, %v985
  %v988 = vsel %vm227, %v986, 0
  %990 = vmatprep.subr.mxu0 0.0
  %991 = vmatpush1.msra.mxu0 %v221
  %992 = vmatprep.subr.mxu0 0.0
  %993 = vmatpush1.msra.mxu0 0.0
  %994 = vmatprep.subr.mxu0 0.0
  %995 = vmatpush1.msra.mxu0 0.0
  %996 = vmatprep.subr.mxu0 0.0
  %997 = vmatpush1.msra.mxu0 0.0
  %998 = vmatprep.subr.mxu0 0.0
  %999 = vmatpush1.msra.mxu0 0.0
  %1000 = vmatprep.subr.mxu0 0.0
  %1001 = vmatpush1.msra.mxu0 0.0
  %1002 = vmatprep.subr.mxu0 0.0
  %1003 = vmatpush1.msra.mxu0 0.0
  %1004 = vmatprep.subr.mxu0 0.0
  %1005 = vmatpush1.msra.mxu0 0.0
  %1006 = vmatprep.subr.mxu0 0.0
  %1007 = vmatpush1.msra.mxu0 0.0
  %1008 = vmatprep.subr.mxu0 0.0
  %1009 = vmatpush1.msra.mxu0 0.0
  %1010 = vmatprep.subr.mxu0 0.0
  %1011 = vmatpush1.msra.mxu0 0.0
  %1012 = vmatprep.subr.mxu0 0.0
  %1013 = vmatpush1.msra.mxu0 0.0
  %1014 = vmatprep.subr.mxu0 0.0
  %1015 = vmatpush1.msra.mxu0 0.0
  %1016 = vmatprep.subr.mxu0 0.0
  %1017 = vmatpush1.msra.mxu0 0.0
  %1018 = vmatprep.subr.mxu0 0.0
  %1019 = vmatpush1.msra.mxu0 0.0
  %1020 = vmatprep.subr.mxu0 0.0
  %1021 = vmatpush1.msra.mxu0 0.0
  %1022 = vmatprep.subr.mxu0 0.0
  %1023 = vmatpush1.msra.mxu0 0.0
  %1024 = vmatprep.subr.mxu0 0.0
  %1025 = vmatpush1.msra.mxu0 0.0
  %1026 = vmatprep.subr.mxu0 0.0
  %1027 = vmatpush1.msra.mxu0 0.0
  %1028 = vmatprep.subr.mxu0 0.0
  %1029 = vmatpush1.msra.mxu0 0.0
  %1030 = vmatprep.subr.mxu0 0.0
  %1031 = vmatpush1.msra.mxu0 0.0
  %1032 = vmatprep.subr.mxu0 0.0
  %1033 = vmatpush1.msra.mxu0 0.0
  %1034 = vmatprep.subr.mxu0 0.0
  %1035 = vmatpush1.msra.mxu0 0.0
  %1036 = vmatprep.subr.mxu0 0.0
  %1037 = vmatpush1.msra.mxu0 0.0
  %1038 = vmatprep.subr.mxu0 0.0
  %1039 = vmatpush1.msra.mxu0 0.0
  %1040 = vmatprep.subr.mxu0 0.0
  %1041 = vmatpush1.msra.mxu0 0.0
  %1042 = vmatprep.subr.mxu0 0.0
  %1043 = vmatpush1.msra.mxu0 0.0
  %1044 = vmatprep.subr.mxu0 0.0
  %1045 = vmatpush1.msra.mxu0 0.0
  %1046 = vmatprep.subr.mxu0 0.0
  %1047 = vmatpush1.msra.mxu0 0.0
  %1048 = vmatprep.subr.mxu0 0.0
  %1049 = vmatpush1.msra.mxu0 0.0
  %1050 = vmatprep.subr.mxu0 0.0
  %1051 = vmatpush1.msra.mxu0 0.0
  %1052 = vmatprep.subr.mxu0 0.0
  %1053 = vmatpush1.msra.mxu0 0.0
  %1054 = vmatprep.mubr.f32.mxu0 0.0
  %1055 = vmatmul.mubr.f32.gmra.mrb[0].mxu0 %v988
  %v1056 = vpop.f32.mrb[0].mxu0
  %v1057 = vadd.f32 0.0, %v1056
  %v1058 = vpop.f32.mrb[0].mxu0
  %1059 = vdwg.mxu0
  %1060 = vrot.lane.b32.xlu0 %v120, 120
  %v1061 = vpop.permute.xlu0 %1060
  %1062 = vrot.lane.b32.xlu0 %v120, 88
  %v1063 = vpop.permute.xlu0 %1062
  %v1064 = vsel %vm227, %v1061, 0
  %v1066 = vsel %vm227, %v1063, 0
  %1068 = vmatprep.subr.mxu0 0.0
  %1069 = vmatpush1.xpose.msra.mxu0 %v1066
  %1070 = vmatprep.subr.mxu0 0.0
  %1071 = vmatpush1.xpose.msra.mxu0 0.0
  %1072 = vmatprep.subr.mxu0 0.0
  %1073 = vmatpush1.xpose.msra.mxu0 0.0
  %1074 = vmatprep.subr.mxu0 0.0
  %1075 = vmatpush1.xpose.msra.mxu0 0.0
  %1076 = vmatprep.subr.mxu0 0.0
  %1077 = vmatpush1.xpose.msra.mxu0 0.0
  %1078 = vmatprep.subr.mxu0 0.0
  %1079 = vmatpush1.xpose.msra.mxu0 0.0
  %1080 = vmatprep.subr.mxu0 0.0
  %1081 = vmatpush1.xpose.msra.mxu0 0.0
  %1082 = vmatprep.subr.mxu0 0.0
  %1083 = vmatpush1.xpose.msra.mxu0 0.0
  %1084 = vmatprep.subr.mxu0 0.0
  %1085 = vmatpush1.xpose.msra.mxu0 0.0
  %1086 = vmatprep.subr.mxu0 0.0
  %1087 = vmatpush1.xpose.msra.mxu0 0.0
  %1088 = vmatprep.subr.mxu0 0.0
  %1089 = vmatpush1.xpose.msra.mxu0 0.0
  %1090 = vmatprep.subr.mxu0 0.0
  %1091 = vmatpush1.xpose.msra.mxu0 0.0
  %1092 = vmatprep.subr.mxu0 0.0
  %1093 = vmatpush1.xpose.msra.mxu0 0.0
  %1094 = vmatprep.subr.mxu0 0.0
  %1095 = vmatpush1.xpose.msra.mxu0 0.0
  %1096 = vmatprep.subr.mxu0 0.0
  %1097 = vmatpush1.xpose.msra.mxu0 0.0
  %1098 = vmatprep.subr.mxu0 0.0
  %1099 = vmatpush1.xpose.msra.mxu0 0.0
  %1100 = vmatprep.subr.mxu0 0.0
  %1101 = vmatpush1.xpose.msra.mxu0 0.0
  %1102 = vmatprep.subr.mxu0 0.0
  %1103 = vmatpush1.xpose.msra.mxu0 0.0
  %1104 = vmatprep.subr.mxu0 0.0
  %1105 = vmatpush1.xpose.msra.mxu0 0.0
  %1106 = vmatprep.subr.mxu0 0.0
  %1107 = vmatpush1.xpose.msra.mxu0 0.0
  %1108 = vmatprep.subr.mxu0 0.0
  %1109 = vmatpush1.xpose.msra.mxu0 0.0
  %1110 = vmatprep.subr.mxu0 0.0
  %1111 = vmatpush1.xpose.msra.mxu0 0.0
  %1112 = vmatprep.subr.mxu0 0.0
  %1113 = vmatpush1.xpose.msra.mxu0 0.0
  %1114 = vmatprep.subr.mxu0 0.0
  %1115 = vmatpush1.xpose.msra.mxu0 0.0
  %1116 = vmatprep.subr.mxu0 0.0
  %1117 = vmatpush1.xpose.msra.mxu0 0.0
  %1118 = vmatprep.subr.mxu0 0.0
  %1119 = vmatpush1.xpose.msra.mxu0 0.0
  %1120 = vmatprep.subr.mxu0 0.0
  %1121 = vmatpush1.xpose.msra.mxu0 0.0
  %1122 = vmatprep.subr.mxu0 0.0
  %1123 = vmatpush1.xpose.msra.mxu0 0.0
  %1124 = vmatprep.subr.mxu0 0.0
  %1125 = vmatpush1.xpose.msra.mxu0 0.0
  %1126 = vmatprep.subr.mxu0 0.0
  %1127 = vmatpush1.xpose.msra.mxu0 0.0
  %1128 = vmatprep.subr.mxu0 0.0
  %1129 = vmatpush1.xpose.msra.mxu0 0.0
  %1130 = vmatprep.subr.mxu0 0.0
  %1131 = vmatpush1.xpose.msra.mxu0 0.0
  %1132 = vmatprep.mubr.f32.mxu0 0.0
  %1133 = vmatmul.mubr.f32.gmra.mrb[0].mxu0 %v1064
  %v1134 = vpop.f32.mrb[0].mxu0
  %v1135 = vadd.f32 0.0, %v1134
  %v1136 = vpop.f32.mrb[0].mxu0
  %1137 = vdwg.mxu0
  %v1138 = vsel %vm227, %v1135, -inf
  %1139 = vmax.xlane.f32.xlu0 %v1138
  %v1140 = vpop.xlane.xlu0 %1139
  %v1141 = vsub.f32 %v1135, %v1140
  %v1142 = vmul.f32 %v1141, 1.442695
  %v1143 = vpow.pop %v1142
  %v1144 = vsel %vm227, %v1143, 0.0
  %1145 = vadd.xlane.f32.xlu0 %v1144
  %v1146 = vpop.xlane.xlu0 %1145
  %v1147 = vrcp.pop %v1146
  %v1148 = vmul.f32 %v1143, %v1147
  %1150 = vrot.lane.b32.xlu0 %v221, 120
  %v1151 = vpop.permute.xlu0 %1150
  %v1154 = vsel %vm227, %v1148, 0
  %1156 = vmatprep.subr.mxu0 0.0
  %1157 = vmatpush1.msra.mxu0 %v1151
  %1158 = vmatprep.subr.mxu0 0.0
  %1159 = vmatpush1.msra.mxu0 0.0
  %1160 = vmatprep.subr.mxu0 0.0
  %1161 = vmatpush1.msra.mxu0 0.0
  %1162 = vmatprep.subr.mxu0 0.0
  %1163 = vmatpush1.msra.mxu0 0.0
  %1164 = vmatprep.subr.mxu0 0.0
  %1165 = vmatpush1.msra.mxu0 0.0
  %1166 = vmatprep.subr.mxu0 0.0
  %1167 = vmatpush1.msra.mxu0 0.0
  %1168 = vmatprep.subr.mxu0 0.0
  %1169 = vmatpush1.msra.mxu0 0.0
  %1170 = vmatprep.subr.mxu0 0.0
  %1171 = vmatpush1.msra.mxu0 0.0
  %1172 = vmatprep.subr.mxu0 0.0
  %1173 = vmatpush1.msra.mxu0 0.0
  %1174 = vmatprep.subr.mxu0 0.0
  %1175 = vmatpush1.msra.mxu0 0.0
  %1176 = vmatprep.subr.mxu0 0.0
  %1177 = vmatpush1.msra.mxu0 0.0
  %1178 = vmatprep.subr.mxu0 0.0
  %1179 = vmatpush1.msra.mxu0 0.0
  %1180 = vmatprep.subr.mxu0 0.0
  %1181 = vmatpush1.msra.mxu0 0.0
  %1182 = vmatprep.subr.mxu0 0.0
  %1183 = vmatpush1.msra.mxu0 0.0
  %1184 = vmatprep.subr.mxu0 0.0
  %1185 = vmatpush1.msra.mxu0 0.0
  %1186 = vmatprep.subr.mxu0 0.0
  %1187 = vmatpush1.msra.mxu0 0.0
  %1188 = vmatprep.subr.mxu0 0.0
  %1189 = vmatpush1.msra.mxu0 0.0
  %1190 = vmatprep.subr.mxu0 0.0
  %1191 = vmatpush1.msra.mxu0 0.0
  %1192 = vmatprep.subr.mxu0 0.0
  %1193 = vmatpush1.msra.mxu0 0.0
  %1194 = vmatprep.subr.mxu0 0.0
  %1195 = vmatpush1.msra.mxu0 0.0
  %1196 = vmatprep.subr.mxu0 0.0
  %1197 = vmatpush1.msra.mxu0 0.0
  %1198 = vmatprep.subr.mxu0 0.0
  %1199 = vmatpush1.msra.mxu0 0.0
  %1200 = vmatprep.subr.mxu0 0.0
  %1201 = vmatpush1.msra.mxu0 0.0
  %1202 = vmatprep.subr.mxu0 0.0
  %1203 = vmatpush1.msra.mxu0 0.0
  %1204 = vmatprep.subr.mxu0 0.0
  %1205 = vmatpush1.msra.mxu0 0.0
  %1206 = vmatprep.subr.mxu0 0.0
  %1207 = vmatpush1.msra.mxu0 0.0
  %1208 = vmatprep.subr.mxu0 0.0
  %1209 = vmatpush1.msra.mxu0 0.0
  %1210 = vmatprep.subr.mxu0 0.0
  %1211 = vmatpush1.msra.mxu0 0.0
  %1212 = vmatprep.subr.mxu0 0.0
  %1213 = vmatpush1.msra.mxu0 0.0
  %1214 = vmatprep.subr.mxu0 0.0
  %1215 = vmatpush1.msra.mxu0 0.0
  %1216 = vmatprep.subr.mxu0 0.0
  %1217 = vmatpush1.msra.mxu0 0.0
  %1218 = vmatprep.subr.mxu0 0.0
  %1219 = vmatpush1.msra.mxu0 0.0
  %1220 = vmatprep.mubr.f32.mxu0 0.0
  %1221 = vmatmul.mubr.f32.gmra.mrb[0].mxu0 %v1154
  %v1222 = vpop.f32.mrb[0].mxu0
  %v1223 = vadd.f32 0.0, %v1222
  %v1224 = vpop.f32.mrb[0].mxu0
  %1225 = vdwg.mxu0
  %1226 = vrot.lane.b32.xlu0 %v120, 112
  %v1227 = vpop.permute.xlu0 %1226
  %1228 = vrot.lane.b32.xlu0 %v120, 80
  %v1229 = vpop.permute.xlu0 %1228
  %v1230 = vsel %vm227, %v1227, 0
  %v1232 = vsel %vm227, %v1229, 0
  %1234 = vmatprep.subr.mxu0 0.0
  %1235 = vmatpush1.xpose.msra.mxu0 %v1232
  %1236 = vmatprep.subr.mxu0 0.0
  %1237 = vmatpush1.xpose.msra.mxu0 0.0
  %1238 = vmatprep.subr.mxu0 0.0
  %1239 = vmatpush1.xpose.msra.mxu0 0.0
  %1240 = vmatprep.subr.mxu0 0.0
  %1241 = vmatpush1.xpose.msra.mxu0 0.0
  %1242 = vmatprep.subr.mxu0 0.0
  %1243 = vmatpush1.xpose.msra.mxu0 0.0
  %1244 = vmatprep.subr.mxu0 0.0
  %1245 = vmatpush1.xpose.msra.mxu0 0.0
  %1246 = vmatprep.subr.mxu0 0.0
  %1247 = vmatpush1.xpose.msra.mxu0 0.0
  %1248 = vmatprep.subr.mxu0 0.0
  %1249 = vmatpush1.xpose.msra.mxu0 0.0
  %1250 = vmatprep.subr.mxu0 0.0
  %1251 = vmatpush1.xpose.msra.mxu0 0.0
  %1252 = vmatprep.subr.mxu0 0.0
  %1253 = vmatpush1.xpose.msra.mxu0 0.0
  %1254 = vmatprep.subr.mxu0 0.0
  %1255 = vmatpush1.xpose.msra.mxu0 0.0
  %1256 = vmatprep.subr.mxu0 0.0
  %1257 = vmatpush1.xpose.msra.mxu0 0.0
  %1258 = vmatprep.subr.mxu0 0.0
  %1259 = vmatpush1.xpose.msra.mxu0 0.0
  %1260 = vmatprep.subr.mxu0 0.0
  %1261 = vmatpush1.xpose.msra.mxu0 0.0
  %1262 = vmatprep.subr.mxu0 0.0
  %1263 = vmatpush1.xpose.msra.mxu0 0.0
  %1264 = vmatprep.subr.mxu0 0.0
  %1265 = vmatpush1.xpose.msra.mxu0 0.0
  %1266 = vmatprep.subr.mxu0 0.0
  %1267 = vmatpush1.xpose.msra.mxu0 0.0
  %1268 = vmatprep.subr.mxu0 0.0
  %1269 = vmatpush1.xpose.msra.mxu0 0.0
  %1270 = vmatprep.subr.mxu0 0.0
  %1271 = vmatpush1.xpose.msra.mxu0 0.0
  %1272 = vmatprep.subr.mxu0 0.0
  %1273 = vmatpush1.xpose.msra.mxu0 0.0
  %1274 = vmatprep.subr.mxu0 0.0
  %1275 = vmatpush1.xpose.msra.mxu0 0.0
  %1276 = vmatprep.subr.mxu0 0.0
  %1277 = vmatpush1.xpose.msra.mxu0 0.0
  %1278 = vmatprep.subr.mxu0 0.0
  %1279 = vmatpush1.xpose.msra.mxu0 0.0
  %1280 = vmatprep.subr.mxu0 0.0
  %1281 = vmatpush1.xpose.msra.mxu0 0.0
  %1282 = vmatprep.subr.mxu0 0.0
  %1283 = vmatpush1.xpose.msra.mxu0 0.0
  %1284 = vmatprep.subr.mxu0 0.0
  %1285 = vmatpush1.xpose.msra.mxu0 0.0
  %1286 = vmatprep.subr.mxu0 0.0
  %1287 = vmatpush1.xpose.msra.mxu0 0.0
  %1288 = vmatprep.subr.mxu0 0.0
  %1289 = vmatpush1.xpose.msra.mxu0 0.0
  %1290 = vmatprep.subr.mxu0 0.0
  %1291 = vmatpush1.xpose.msra.mxu0 0.0
  %1292 = vmatprep.subr.mxu0 0.0
  %1293 = vmatpush1.xpose.msra.mxu0 0.0
  %1294 = vmatprep.subr.mxu0 0.0
  %1295 = vmatpush1.xpose.msra.mxu0 0.0
  %1296 = vmatprep.subr.mxu0 0.0
  %1297 = vmatpush1.xpose.msra.mxu0 0.0
  %1298 = vmatprep.mubr.f32.mxu0 0.0
  %1299 = vmatmul.mubr.f32.gmra.mrb[0].mxu0 %v1230
  %v1300 = vpop.f32.mrb[0].mxu0
  %v1301 = vadd.f32 0.0, %v1300
  %v1302 = vpop.f32.mrb[0].mxu0
  %1303 = vdwg.mxu0
  %v1304 = vsel %vm227, %v1301, -inf
  %1305 = vmax.xlane.f32.xlu0 %v1304
  %v1306 = vpop.xlane.xlu0 %1305
  %v1307 = vsub.f32 %v1301, %v1306
  %v1308 = vmul.f32 %v1307, 1.442695
  %v1309 = vpow.pop %v1308
  %v1310 = vsel %vm227, %v1309, 0.0
  %1311 = vadd.xlane.f32.xlu0 %v1310
  %v1312 = vpop.xlane.xlu0 %1311
  %v1313 = vrcp.pop %v1312
  %v1314 = vmul.f32 %v1309, %v1313
  %1315 = vrot.lane.b32.xlu0 %v221, 112
  %v1316 = vpop.permute.xlu0 %1315
  %v1319 = vsel %vm227, %v1314, 0
  %1321 = vmatprep.subr.mxu0 0.0
  %1322 = vmatpush1.msra.mxu0 %v1316
  %1323 = vmatprep.subr.mxu0 0.0
  %1324 = vmatpush1.msra.mxu0 0.0
  %1325 = vmatprep.subr.mxu0 0.0
  %1326 = vmatpush1.msra.mxu0 0.0
  %1327 = vmatprep.subr.mxu0 0.0
  %1328 = vmatpush1.msra.mxu0 0.0
  %1329 = vmatprep.subr.mxu0 0.0
  %1330 = vmatpush1.msra.mxu0 0.0
  %1331 = vmatprep.subr.mxu0 0.0
  %1332 = vmatpush1.msra.mxu0 0.0
  %1333 = vmatprep.subr.mxu0 0.0
  %1334 = vmatpush1.msra.mxu0 0.0
  %1335 = vmatprep.subr.mxu0 0.0
  %1336 = vmatpush1.msra.mxu0 0.0
  %1337 = vmatprep.subr.mxu0 0.0
  %1338 = vmatpush1.msra.mxu0 0.0
  %1339 = vmatprep.subr.mxu0 0.0
  %1340 = vmatpush1.msra.mxu0 0.0
  %1341 = vmatprep.subr.mxu0 0.0
  %1342 = vmatpush1.msra.mxu0 0.0
  %1343 = vmatprep.subr.mxu0 0.0
  %1344 = vmatpush1.msra.mxu0 0.0
  %1345 = vmatprep.subr.mxu0 0.0
  %1346 = vmatpush1.msra.mxu0 0.0
  %1347 = vmatprep.subr.mxu0 0.0
  %1348 = vmatpush1.msra.mxu0 0.0
  %1349 = vmatprep.subr.mxu0 0.0
  %1350 = vmatpush1.msra.mxu0 0.0
  %1351 = vmatprep.subr.mxu0 0.0
  %1352 = vmatpush1.msra.mxu0 0.0
  %1353 = vmatprep.subr.mxu0 0.0
  %1354 = vmatpush1.msra.mxu0 0.0
  %1355 = vmatprep.subr.mxu0 0.0
  %1356 = vmatpush1.msra.mxu0 0.0
  %1357 = vmatprep.subr.mxu0 0.0
  %1358 = vmatpush1.msra.mxu0 0.0
  %1359 = vmatprep.subr.mxu0 0.0
  %1360 = vmatpush1.msra.mxu0 0.0
  %1361 = vmatprep.subr.mxu0 0.0
  %1362 = vmatpush1.msra.mxu0 0.0
  %1363 = vmatprep.subr.mxu0 0.0
  %1364 = vmatpush1.msra.mxu0 0.0
  %1365 = vmatprep.subr.mxu0 0.0
  %1366 = vmatpush1.msra.mxu0 0.0
  %1367 = vmatprep.subr.mxu0 0.0
  %1368 = vmatpush1.msra.mxu0 0.0
  %1369 = vmatprep.subr.mxu0 0.0
  %1370 = vmatpush1.msra.mxu0 0.0
  %1371 = vmatprep.subr.mxu0 0.0
  %1372 = vmatpush1.msra.mxu0 0.0
  %1373 = vmatprep.subr.mxu0 0.0
  %1374 = vmatpush1.msra.mxu0 0.0
  %1375 = vmatprep.subr.mxu0 0.0
  %1376 = vmatpush1.msra.mxu0 0.0
  %1377 = vmatprep.subr.mxu0 0.0
  %1378 = vmatpush1.msra.mxu0 0.0
  %1379 = vmatprep.subr.mxu0 0.0
  %1380 = vmatpush1.msra.mxu0 0.0
  %1381 = vmatprep.subr.mxu0 0.0
  %1382 = vmatpush1.msra.mxu0 0.0
  %1383 = vmatprep.subr.mxu0 0.0
  %1384 = vmatpush1.msra.mxu0 0.0
  %1385 = vmatprep.mubr.f32.mxu0 0.0
  %1386 = vmatmul.mubr.f32.gmra.mrb[0].mxu0 %v1319
  %v1387 = vpop.f32.mrb[0].mxu0
  %v1388 = vadd.f32 0.0, %v1387
  %v1389 = vpop.f32.mrb[0].mxu0
  %1390 = vdwg.mxu0
  %1391 = vrot.lane.b32.xlu0 %v120, 104
  %v1392 = vpop.permute.xlu0 %1391
  %1393 = vrot.lane.b32.xlu0 %v120, 72
  %v1394 = vpop.permute.xlu0 %1393
  %v1395 = vsel %vm227, %v1392, 0
  %v1397 = vsel %vm227, %v1394, 0
  %1399 = vmatprep.subr.mxu0 0.0
  %1400 = vmatpush1.xpose.msra.mxu0 %v1397
  %1401 = vmatprep.subr.mxu0 0.0
  %1402 = vmatpush1.xpose.msra.mxu0 0.0
  %1403 = vmatprep.subr.mxu0 0.0
  %1404 = vmatpush1.xpose.msra.mxu0 0.0
  %1405 = vmatprep.subr.mxu0 0.0
  %1406 = vmatpush1.xpose.msra.mxu0 0.0
  %1407 = vmatprep.subr.mxu0 0.0
  %1408 = vmatpush1.xpose.msra.mxu0 0.0
  %1409 = vmatprep.subr.mxu0 0.0
  %1410 = vmatpush1.xpose.msra.mxu0 0.0
  %1411 = vmatprep.subr.mxu0 0.0
  %1412 = vmatpush1.xpose.msra.mxu0 0.0
  %1413 = vmatprep.subr.mxu0 0.0
  %1414 = vmatpush1.xpose.msra.mxu0 0.0
  %1415 = vmatprep.subr.mxu0 0.0
  %1416 = vmatpush1.xpose.msra.mxu0 0.0
  %1417 = vmatprep.subr.mxu0 0.0
  %1418 = vmatpush1.xpose.msra.mxu0 0.0
  %1419 = vmatprep.subr.mxu0 0.0
  %1420 = vmatpush1.xpose.msra.mxu0 0.0
  %1421 = vmatprep.subr.mxu0 0.0
  %1422 = vmatpush1.xpose.msra.mxu0 0.0
  %1423 = vmatprep.subr.mxu0 0.0
  %1424 = vmatpush1.xpose.msra.mxu0 0.0
  %1425 = vmatprep.subr.mxu0 0.0
  %1426 = vmatpush1.xpose.msra.mxu0 0.0
  %1427 = vmatprep.subr.mxu0 0.0
  %1428 = vmatpush1.xpose.msra.mxu0 0.0
  %1429 = vmatprep.subr.mxu0 0.0
  %1430 = vmatpush1.xpose.msra.mxu0 0.0
  %1431 = vmatprep.subr.mxu0 0.0
  %1432 = vmatpush1.xpose.msra.mxu0 0.0
  %1433 = vmatprep.subr.mxu0 0.0
  %1434 = vmatpush1.xpose.msra.mxu0 0.0
  %1435 = vmatprep.subr.mxu0 0.0
  %1436 = vmatpush1.xpose.msra.mxu0 0.0
  %1437 = vmatprep.subr.mxu0 0.0
  %1438 = vmatpush1.xpose.msra.mxu0 0.0
  %1439 = vmatprep.subr.mxu0 0.0
  %1440 = vmatpush1.xpose.msra.mxu0 0.0
  %1441 = vmatprep.subr.mxu0 0.0
  %1442 = vmatpush1.xpose.msra.mxu0 0.0
  %1443 = vmatprep.subr.mxu0 0.0
  %1444 = vmatpush1.xpose.msra.mxu0 0.0
  %1445 = vmatprep.subr.mxu0 0.0
  %1446 = vmatpush1.xpose.msra.mxu0 0.0
  %1447 = vmatprep.subr.mxu0 0.0
  %1448 = vmatpush1.xpose.msra.mxu0 0.0
  %1449 = vmatprep.subr.mxu0 0.0
  %1450 = vmatpush1.xpose.msra.mxu0 0.0
  %1451 = vmatprep.subr.mxu0 0.0
  %1452 = vmatpush1.xpose.msra.mxu0 0.0
  %1453 = vmatprep.subr.mxu0 0.0
  %1454 = vmatpush1.xpose.msra.mxu0 0.0
  %1455 = vmatprep.subr.mxu0 0.0
  %1456 = vmatpush1.xpose.msra.mxu0 0.0
  %1457 = vmatprep.subr.mxu0 0.0
  %1458 = vmatpush1.xpose.msra.mxu0 0.0
  %1459 = vmatprep.subr.mxu0 0.0
  %1460 = vmatpush1.xpose.msra.mxu0 0.0
  %1461 = vmatprep.subr.mxu0 0.0
  %1462 = vmatpush1.xpose.msra.mxu0 0.0
  %1463 = vmatprep.mubr.f32.mxu0 0.0
  %1464 = vmatmul.mubr.f32.gmra.mrb[0].mxu0 %v1395
  %v1465 = vpop.f32.mrb[0].mxu0
  %v1466 = vadd.f32 0.0, %v1465
  %v1467 = vpop.f32.mrb[0].mxu0
  %1468 = vdwg.mxu0
  %v1469 = vsel %vm227, %v1466, -inf
  %1470 = vmax.xlane.f32.xlu0 %v1469
  %v1471 = vpop.xlane.xlu0 %1470
  %v1472 = vsub.f32 %v1466, %v1471
  %v1473 = vmul.f32 %v1472, 1.442695
  %v1474 = vpow.pop %v1473
  %v1475 = vsel %vm227, %v1474, 0.0
  %1476 = vadd.xlane.f32.xlu0 %v1475
  %v1477 = vpop.xlane.xlu0 %1476
  %v1478 = vrcp.pop %v1477
  %v1479 = vmul.f32 %v1474, %v1478
  %1480 = vrot.lane.b32.xlu0 %v221, 104
  %v1481 = vpop.permute.xlu0 %1480
  %v1484 = vsel %vm227, %v1479, 0
  %1486 = vmatprep.subr.mxu0 0.0
  %1487 = vmatpush1.msra.mxu0 %v1481
  %1488 = vmatprep.subr.mxu0 0.0
  %1489 = vmatpush1.msra.mxu0 0.0
  %1490 = vmatprep.subr.mxu0 0.0
  %1491 = vmatpush1.msra.mxu0 0.0
  %1492 = vmatprep.subr.mxu0 0.0
  %1493 = vmatpush1.msra.mxu0 0.0
  %1494 = vmatprep.subr.mxu0 0.0
  %1495 = vmatpush1.msra.mxu0 0.0
  %1496 = vmatprep.subr.mxu0 0.0
  %1497 = vmatpush1.msra.mxu0 0.0
  %1498 = vmatprep.subr.mxu0 0.0
  %1499 = vmatpush1.msra.mxu0 0.0
  %1500 = vmatprep.subr.mxu0 0.0
  %1501 = vmatpush1.msra.mxu0 0.0
  %1502 = vmatprep.subr.mxu0 0.0
  %1503 = vmatpush1.msra.mxu0 0.0
  %1504 = vmatprep.subr.mxu0 0.0
  %1505 = vmatpush1.msra.mxu0 0.0
  %1506 = vmatprep.subr.mxu0 0.0
  %1507 = vmatpush1.msra.mxu0 0.0
  %1508 = vmatprep.subr.mxu0 0.0
  %1509 = vmatpush1.msra.mxu0 0.0
  %1510 = vmatprep.subr.mxu0 0.0
  %1511 = vmatpush1.msra.mxu0 0.0
  %1512 = vmatprep.subr.mxu0 0.0
  %1513 = vmatpush1.msra.mxu0 0.0
  %1514 = vmatprep.subr.mxu0 0.0
  %1515 = vmatpush1.msra.mxu0 0.0
  %1516 = vmatprep.subr.mxu0 0.0
  %1517 = vmatpush1.msra.mxu0 0.0
  %1518 = vmatprep.subr.mxu0 0.0
  %1519 = vmatpush1.msra.mxu0 0.0
  %1520 = vmatprep.subr.mxu0 0.0
  %1521 = vmatpush1.msra.mxu0 0.0
  %1522 = vmatprep.subr.mxu0 0.0
  %1523 = vmatpush1.msra.mxu0 0.0
  %1524 = vmatprep.subr.mxu0 0.0
  %1525 = vmatpush1.msra.mxu0 0.0
  %1526 = vmatprep.subr.mxu0 0.0
  %1527 = vmatpush1.msra.mxu0 0.0
  %1528 = vmatprep.subr.mxu0 0.0
  %1529 = vmatpush1.msra.mxu0 0.0
  %1530 = vmatprep.subr.mxu0 0.0
  %1531 = vmatpush1.msra.mxu0 0.0
  %1532 = vmatprep.subr.mxu0 0.0
  %1533 = vmatpush1.msra.mxu0 0.0
  %1534 = vmatprep.subr.mxu0 0.0
  %1535 = vmatpush1.msra.mxu0 0.0
  %1536 = vmatprep.subr.mxu0 0.0
  %1537 = vmatpush1.msra.mxu0 0.0
  %1538 = vmatprep.subr.mxu0 0.0
  %1539 = vmatpush1.msra.mxu0 0.0
  %1540 = vmatprep.subr.mxu0 0.0
  %1541 = vmatpush1.msra.mxu0 0.0
  %1542 = vmatprep.subr.mxu0 0.0
  %1543 = vmatpush1.msra.mxu0 0.0
  %1544 = vmatprep.subr.mxu0 0.0
  %1545 = vmatpush1.msra.mxu0 0.0
  %1546 = vmatprep.subr.mxu0 0.0
  %1547 = vmatpush1.msra.mxu0 0.0
  %1548 = vmatprep.subr.mxu0 0.0
  %1549 = vmatpush1.msra.mxu0 0.0
  %1550 = vmatprep.mubr.f32.mxu0 0.0
  %1551 = vmatmul.mubr.f32.gmra.mrb[0].mxu0 %v1484
  %v1552 = vpop.f32.mrb[0].mxu0
  %v1553 = vadd.f32 0.0, %v1552
  %v1554 = vpop.f32.mrb[0].mxu0
  %1555 = vdwg.mxu0
  %1557 = vrot.lane.b32.xlu0 %v1223, 8
  %v1558 = vpop.permute.xlu0 %1557
  %1561 = vrot.lane.b32.xlu0 %v1388, 16
  %v1562 = vpop.permute.xlu0 %1561
  %1565 = vrot.lane.b32.xlu0 %v1553, 24
  %v1566 = vpop.permute.xlu0 %1565
  %v1568 = vsel %vm227, %v1057, %v1558
  %v1569 = vsel %vm895, %v1568, %v1562
  %v1570 = vsel %vm897, %v1569, %v1566
  %1575 = vrot.lane.b32.xlu0 %v32, 96
  %v1576 = vpop.permute.xlu0 %1575
  %1577 = vrot.lane.b32.xlu0 %v33, 96
  %v1578 = vpop.permute.xlu0 %1577
  %1579 = vrot.lane.b32.xlu0 %v34, 96
  %v1580 = vpop.permute.xlu0 %1579
  %1581 = vrot.lane.b32.xlu0 %v35, 96
  %v1582 = vpop.permute.xlu0 %1581
  %1588 = vrot.lane.b32.xlu0 %v126, 96
  %v1589 = vpop.permute.xlu0 %1588
  %v1592 = vsel %vm41, %v898, 0
  %v1595 = vsel %vm41, %v1570, 0
  %1597 = vmatprep.subr.mxu0 0.0
  %1598 = vmatpush1.msra.mxu0 %v1576
  %1599 = vmatprep.subr.mxu0 0.0
  %1600 = vmatpush1.msra.mxu0 %v1578
  %1601 = vmatprep.subr.mxu0 0.0
  %1602 = vmatpush1.msra.mxu0 %v1580
  %1603 = vmatprep.subr.mxu0 0.0
  %1604 = vmatpush1.msra.mxu0 %v1582
  %1605 = vmatprep.subr.mxu0 0.0
  %1606 = vmatpush1.msra.mxu0 0.0
  %1607 = vmatprep.subr.mxu0 0.0
  %1608 = vmatpush1.msra.mxu0 0.0
  %1609 = vmatprep.subr.mxu0 0.0
  %1610 = vmatpush1.msra.mxu0 0.0
  %1611 = vmatprep.subr.mxu0 0.0
  %1612 = vmatpush1.msra.mxu0 0.0
  %1613 = vmatprep.subr.mxu0 0.0
  %1614 = vmatpush1.msra.mxu0 0.0
  %1615 = vmatprep.subr.mxu0 0.0
  %1616 = vmatpush1.msra.mxu0 0.0
  %1617 = vmatprep.subr.mxu0 0.0
  %1618 = vmatpush1.msra.mxu0 0.0
  %1619 = vmatprep.subr.mxu0 0.0
  %1620 = vmatpush1.msra.mxu0 0.0
  %1621 = vmatprep.subr.mxu0 0.0
  %1622 = vmatpush1.msra.mxu0 0.0
  %1623 = vmatprep.subr.mxu0 0.0
  %1624 = vmatpush1.msra.mxu0 0.0
  %1625 = vmatprep.subr.mxu0 0.0
  %1626 = vmatpush1.msra.mxu0 0.0
  %1627 = vmatprep.subr.mxu0 0.0
  %1628 = vmatpush1.msra.mxu0 0.0
  %1629 = vmatprep.subr.mxu0 0.0
  %1630 = vmatpush1.msra.mxu0 0.0
  %1631 = vmatprep.subr.mxu0 0.0
  %1632 = vmatpush1.msra.mxu0 0.0
  %1633 = vmatprep.subr.mxu0 0.0
  %1634 = vmatpush1.msra.mxu0 0.0
  %1635 = vmatprep.subr.mxu0 0.0
  %1636 = vmatpush1.msra.mxu0 0.0
  %1637 = vmatprep.subr.mxu0 0.0
  %1638 = vmatpush1.msra.mxu0 0.0
  %1639 = vmatprep.subr.mxu0 0.0
  %1640 = vmatpush1.msra.mxu0 0.0
  %1641 = vmatprep.subr.mxu0 0.0
  %1642 = vmatpush1.msra.mxu0 0.0
  %1643 = vmatprep.subr.mxu0 0.0
  %1644 = vmatpush1.msra.mxu0 0.0
  %1645 = vmatprep.subr.mxu0 0.0
  %1646 = vmatpush1.msra.mxu0 0.0
  %1647 = vmatprep.subr.mxu0 0.0
  %1648 = vmatpush1.msra.mxu0 0.0
  %1649 = vmatprep.subr.mxu0 0.0
  %1650 = vmatpush1.msra.mxu0 0.0
  %1651 = vmatprep.subr.mxu0 0.0
  %1652 = vmatpush1.msra.mxu0 0.0
  %1653 = vmatprep.subr.mxu0 0.0
  %1654 = vmatpush1.msra.mxu0 0.0
  %1655 = vmatprep.subr.mxu0 0.0
  %1656 = vmatpush1.msra.mxu0 0.0
  %1657 = vmatprep.subr.mxu0 0.0
  %1658 = vmatpush1.msra.mxu0 0.0
  %1659 = vmatprep.subr.mxu0 0.0
  %1660 = vmatpush1.msra.mxu0 0.0
  %1661 = vmatprep.mubr.f32.mxu0 0.0
  %1662 = vmatmul.mubr.f32.gmra.mrb[0].mxu0 %v1592
  %v1663 = vpop.f32.mrb[0].mxu0
  %v1664 = vadd.f32 %v1589, %v1663
  %v1665 = vpop.f32.mrb[0].mxu0
  %1666 = vmatprep.mubr.f32.mxu0 0.0
  %1667 = vmatmul.mubr.f32.gmra.mrb[0].mxu0 %v1595
  %v1668 = vpop.f32.mrb[0].mxu0
  %v1669 = vadd.f32 %v1589, %v1668
  %v1670 = vpop.f32.mrb[0].mxu0
  %1671 = vdwg.mxu0
  %v1672 = vadd.f32 %v14, %v1664
  %v1673 = vadd.f32 %v15, %v1669
  %v1674 = vsel %vm41, %v1672, 0.0
  %1675 = vadd.xlane.f32.xlu0 %v1674
  %v1676 = vpop.xlane.xlu0 %1675
  %v1677 = vsel %vm41, %v1673, 0.0
  %1678 = vadd.xlane.f32.xlu0 %v1677
  %v1679 = vpop.xlane.xlu0 %1678
  %v1680 = vrcp.pop 32.0
  %v1681 = vmul.f32 %v1676, %v1680
  %v1682 = vmul.f32 %v1679, %v1680
  %v1683 = vsub.f32 %v1672, %v1681
  %v1684 = vsub.f32 %v1673, %v1682
  %v1685 = vmul.f32 %v1683, %v1683
  %v1686 = vmul.f32 %v1684, %v1684
  %v1687 = vsel %vm41, %v1685, 0.0
  %1688 = vadd.xlane.f32.xlu0 %v1687
  %v1689 = vpop.xlane.xlu0 %1688
  %v1690 = vsel %vm41, %v1686, 0.0
  %1691 = vadd.xlane.f32.xlu0 %v1690
  %v1692 = vpop.xlane.xlu0 %1691
  %v1693 = vmul.f32 %v1689, %v1680
  %v1694 = vmul.f32 %v1692, %v1680
  %v1695 = vadd.f32 %v1693, 1e-05
  %v1696 = vadd.f32 %v1694, 1e-05
  %v1697 = vrsqrt.pop %v1695
  %v1698 = vrsqrt.pop %v1696
  %v1699 = vmul.f32 %v1683, %v1697
  %v1700 = vmul.f32 %v1684, %v1698
  %v1701 = vlaneseq
  %v1702 = vshrl.u32 %v1701, 7
  %v1703 = vsub.s32 3, %v1702
  %v1704 = vrot.slane %v36, %v1703
  %1706 = vrot.lane.b32.xlu0 %v1704, 96
  %v1707 = vpop.permute.xlu0 %1706
  %v1709 = vmul.f32 %v1699, %v1707
  %v1710 = vmul.f32 %v1700, %v1707
  %v1711 = vlaneseq
  %v1712 = vshrl.u32 %v1711, 7
  %v1713 = vsub.s32 4, %v1712
  %v1714 = vrot.slane %v36, %v1713
  %v1715 = vadd.f32 %v1709, %v1714
  %v1716 = vadd.f32 %v1710, %v1714
  %v1717 = vlaneseq
  %v1718 = vshrl.u32 %v1717, 7
  %v1719 = vsub.s32 1, %v1718
  %v1720 = vrot.slane %v36, %v1719
  %v1722 = vsel %vm41, %v1715, 0
  %v1725 = vsel %vm41, %v1716, 0
  %1727 = vmatprep.subr.mxu0 0.0
  %1728 = vmatpush1.msra.mxu0 %v24
  %1729 = vmatprep.subr.mxu0 0.0
  %1730 = vmatpush1.msra.mxu0 %v25
  %1731 = vmatprep.subr.mxu0 0.0
  %1732 = vmatpush1.msra.mxu0 %v26
  %1733 = vmatprep.subr.mxu0 0.0
  %1734 = vmatpush1.msra.mxu0 %v27
  %1735 = vmatprep.subr.mxu0 0.0
  %1736 = vmatpush1.msra.mxu0 0.0
  %1737 = vmatprep.subr.mxu0 0.0
  %1738 = vmatpush1.msra.mxu0 0.0
  %1739 = vmatprep.subr.mxu0 0.0
  %1740 = vmatpush1.msra.mxu0 0.0
  %1741 = vmatprep.subr.mxu0 0.0
  %1742 = vmatpush1.msra.mxu0 0.0
  %1743 = vmatprep.subr.mxu0 0.0
  %1744 = vmatpush1.msra.mxu0 0.0
  %1745 = vmatprep.subr.mxu0 0.0
  %1746 = vmatpush1.msra.mxu0 0.0
  %1747 = vmatprep.subr.mxu0 0.0
  %1748 = vmatpush1.msra.mxu0 0.0
  %1749 = vmatprep.subr.mxu0 0.0
  %1750 = vmatpush1.msra.mxu0 0.0
  %1751 = vmatprep.subr.mxu0 0.0
  %1752 = vmatpush1.msra.mxu0 0.0
  %1753 = vmatprep.subr.mxu0 0.0
  %1754 = vmatpush1.msra.mxu0 0.0
  %1755 = vmatprep.subr.mxu0 0.0
  %1756 = vmatpush1.msra.mxu0 0.0
  %1757 = vmatprep.subr.mxu0 0.0
  %1758 = vmatpush1.msra.mxu0 0.0
  %1759 = vmatprep.subr.mxu0 0.0
  %1760 = vmatpush1.msra.mxu0 0.0
  %1761 = vmatprep.subr.mxu0 0.0
  %1762 = vmatpush1.msra.mxu0 0.0
  %1763 = vmatprep.subr.mxu0 0.0
  %1764 = vmatpush1.msra.mxu0 0.0
  %1765 = vmatprep.subr.mxu0 0.0
  %1766 = vmatpush1.msra.mxu0 0.0
  %1767 = vmatprep.subr.mxu0 0.0
  %1768 = vmatpush1.msra.mxu0 0.0
  %1769 = vmatprep.subr.mxu0 0.0
  %1770 = vmatpush1.msra.mxu0 0.0
  %1771 = vmatprep.subr.mxu0 0.0
  %1772 = vmatpush1.msra.mxu0 0.0
  %1773 = vmatprep.subr.mxu0 0.0
  %1774 = vmatpush1.msra.mxu0 0.0
  %1775 = vmatprep.subr.mxu0 0.0
  %1776 = vmatpush1.msra.mxu0 0.0
  %1777 = vmatprep.subr.mxu0 0.0
  %1778 = vmatpush1.msra.mxu0 0.0
  %1779 = vmatprep.subr.mxu0 0.0
  %1780 = vmatpush1.msra.mxu0 0.0
  %1781 = vmatprep.subr.mxu0 0.0
  %1782 = vmatpush1.msra.mxu0 0.0
  %1783 = vmatprep.subr.mxu0 0.0
  %1784 = vmatpush1.msra.mxu0 0.0
  %1785 = vmatprep.subr.mxu0 0.0
  %1786 = vmatpush1.msra.mxu0 0.0
  %1787 = vmatprep.subr.mxu0 0.0
  %1788 = vmatpush1.msra.mxu0 0.0
  %1789 = vmatprep.subr.mxu0 0.0
  %1790 = vmatpush1.msra.mxu0 0.0
  %1791 = vmatprep.mubr.f32.mxu0 0.0
  %1792 = vmatmul.mubr.f32.gmra.mrb[0].mxu0 %v1722
  %v1793 = vpop.f32.mrb[0].mxu0
  %v1794 = vadd.f32 %v1720, %v1793
  %v1795 = vpop.f32.mrb[0].mxu0
  %1796 = vmatprep.mubr.f32.mxu0 0.0
  %1797 = vmatmul.mubr.f32.gmra.mrb[0].mxu0 %v1725
  %v1798 = vpop.f32.mrb[0].mxu0
  %v1799 = vadd.f32 %v1720, %v1798
  %v1800 = vpop.f32.mrb[0].mxu0
  %1801 = vdwg.mxu0
  %v1802 = vmax.f32 %v1794, 0.0
  %v1803 = vmax.f32 %v1799, 0.0
  %vm1804 = vcmask 523264
  %v1806 = vsel %vm1804, %v1802, 0
  %v1809 = vsel %vm1804, %v1803, 0
  %1811 = vmatprep.subr.mxu0 0.0
  %1812 = vmatpush1.msra.mxu0 %v28
  %1813 = vmatprep.subr.mxu0 0.0
  %1814 = vmatpush1.msra.mxu0 %v29
  %1815 = vmatprep.subr.mxu0 0.0
  %1816 = vmatpush1.msra.mxu0 %v30
  %1817 = vmatprep.subr.mxu0 0.0
  %1818 = vmatpush1.msra.mxu0 %v31
  %1819 = vmatprep.subr.mxu0 0.0
  %1820 = vmatpush1.msra.mxu0 %v32
  %1821 = vmatprep.subr.mxu0 0.0
  %1822 = vmatpush1.msra.mxu0 %v33
  %1823 = vmatprep.subr.mxu0 0.0
  %1824 = vmatpush1.msra.mxu0 %v34
  %1825 = vmatprep.subr.mxu0 0.0
  %1826 = vmatpush1.msra.mxu0 %v35
  %1827 = vmatprep.subr.mxu0 0.0
  %1828 = vmatpush1.msra.mxu0 0.0
  %1829 = vmatprep.subr.mxu0 0.0
  %1830 = vmatpush1.msra.mxu0 0.0
  %1831 = vmatprep.subr.mxu0 0.0
  %1832 = vmatpush1.msra.mxu0 0.0
  %1833 = vmatprep.subr.mxu0 0.0
  %1834 = vmatpush1.msra.mxu0 0.0
  %1835 = vmatprep.subr.mxu0 0.0
  %1836 = vmatpush1.msra.mxu0 0.0
  %1837 = vmatprep.subr.mxu0 0.0
  %1838 = vmatpush1.msra.mxu0 0.0
  %1839 = vmatprep.subr.mxu0 0.0
  %1840 = vmatpush1.msra.mxu0 0.0
  %1841 = vmatprep.subr.mxu0 0.0
  %1842 = vmatpush1.msra.mxu0 0.0
  %1843 = vmatprep.subr.mxu0 0.0
  %1844 = vmatpush1.msra.mxu0 0.0
  %1845 = vmatprep.subr.mxu0 0.0
  %1846 = vmatpush1.msra.mxu0 0.0
  %1847 = vmatprep.subr.mxu0 0.0
  %1848 = vmatpush1.msra.mxu0 0.0
  %1849 = vmatprep.subr.mxu0 0.0
  %1850 = vmatpush1.msra.mxu0 0.0
  %1851 = vmatprep.subr.mxu0 0.0
  %1852 = vmatpush1.msra.mxu0 0.0
  %1853 = vmatprep.subr.mxu0 0.0
  %1854 = vmatpush1.msra.mxu0 0.0
  %1855 = vmatprep.subr.mxu0 0.0
  %1856 = vmatpush1.msra.mxu0 0.0
  %1857 = vmatprep.subr.mxu0 0.0
  %1858 = vmatpush1.msra.mxu0 0.0
  %1859 = vmatprep.subr.mxu0 0.0
  %1860 = vmatpush1.msra.mxu0 0.0
  %1861 = vmatprep.subr.mxu0 0.0
  %1862 = vmatpush1.msra.mxu0 0.0
  %1863 = vmatprep.subr.mxu0 0.0
  %1864 = vmatpush1.msra.mxu0 0.0
  %1865 = vmatprep.subr.mxu0 0.0
  %1866 = vmatpush1.msra.mxu0 0.0
  %1867 = vmatprep.subr.mxu0 0.0
  %1868 = vmatpush1.msra.mxu0 0.0
  %1869 = vmatprep.subr.mxu0 0.0
  %1870 = vmatpush1.msra.mxu0 0.0
  %1871 = vmatprep.subr.mxu0 0.0
  %1872 = vmatpush1.msra.mxu0 0.0
  %1873 = vmatprep.subr.mxu0 0.0
  %1874 = vmatpush1.msra.mxu0 0.0
  %1875 = vmatprep.mubr.f32.mxu0 0.0
  %1876 = vmatmul.mubr.f32.gmra.mrb[0].mxu0 %v1806
  %v1877 = vpop.f32.mrb[0].mxu0
  %v1878 = vadd.f32 %v1704, %v1877
  %v1879 = vpop.f32.mrb[0].mxu0
  %1880 = vmatprep.mubr.f32.mxu0 0.0
  %1881 = vmatmul.mubr.f32.gmra.mrb[0].mxu0 %v1809
  %v1882 = vpop.f32.mrb[0].mxu0
  %v1883 = vadd.f32 %v1704, %v1882
  %v1884 = vpop.f32.mrb[0].mxu0
  %1885 = vdwg.mxu0
  %v1886 = vadd.f32 %v1715, %v1878
  %v1887 = vadd.f32 %v1716, %v1883
  %v1888 = vsel %vm41, %v1886, 0.0
  %1889 = vadd.xlane.f32.xlu0 %v1888
  %v1890 = vpop.xlane.xlu0 %1889
  %v1891 = vsel %vm41, %v1887, 0.0
  %1892 = vadd.xlane.f32.xlu0 %v1891
  %v1893 = vpop.xlane.xlu0 %1892
  %v1894 = vmul.f32 %v1890, %v1680
  %v1895 = vmul.f32 %v1893, %v1680
  %v1896 = vsub.f32 %v1886, %v1894
  %v1897 = vsub.f32 %v1887, %v1895
  %v1898 = vmul.f32 %v1896, %v1896
  %v1899 = vmul.f32 %v1897, %v1897
  %v1900 = vsel %vm41, %v1898, 0.0
  %1901 = vadd.xlane.f32.xlu0 %v1900
  %v1902 = vpop.xlane.xlu0 %1901
  %v1903 = vsel %vm41, %v1899, 0.0
  %1904 = vadd.xlane.f32.xlu0 %v1903
  %v1905 = vpop.xlane.xlu0 %1904
  %v1906 = vmul.f32 %v1902, %v1680
  %v1907 = vmul.f32 %v1905, %v1680
  %v1908 = vadd.f32 %v1906, 1e-05
  %v1909 = vadd.f32 %v1907, 1e-05
  %v1910 = vrsqrt.pop %v1908
  %v1911 = vrsqrt.pop %v1909
  %v1912 = vmul.f32 %v1896, %v1910
  %v1913 = vmul.f32 %v1897, %v1911
  %1915 = vrot.lane.b32.xlu0 %v1714, 96
  %v1916 = vpop.permute.xlu0 %1915
  %v1918 = vmul.f32 %v1912, %v1916
  %v1919 = vmul.f32 %v1913, %v1916
  %v1920 = vlaneseq
  %v1921 = vshrl.u32 %v1920, 7
  %v1922 = vsub.s32 5, %v1921
  %v1923 = vrot.slane %v36, %v1922
  %v1924 = vadd.f32 %v1918, %v1923
  %v1925 = vadd.f32 %v1919, %v1923
  %1926 = vst.msk [vmem:[%s3] sm:$0xff] %vm41, %v1924
  %1927 = vst.msk [vmem:[%s3 + $0x8] sm:$0xff] %vm41, %v1925
  // Predicated region
  $region14: #{transformer_encoder_layer.1} parent=0 // pred_check
    _
  $region15: #{transformer_encoder_layer.1} parent=0 // pred_check_branch
    %1929 = sbr.rel (0) target = $region17
  $region16: #{transformer_encoder_layer.1} parent=0 // pred_region
    _
  $region17: #{transformer_encoder_layer.1} parent=0 // pred_fallthru
    _
  // Predicated region
  $region18: #{transformer_encoder_layer.1} parent=0 // pred_check
    _
  $region19: #{transformer_encoder_layer.1} parent=0 // pred_check_branch
    %1931 = sbr.rel (0) target = $region21
  $region20: #{transformer_encoder_layer.1} parent=0 // pred_region
    _
  $region21: #{transformer_encoder_layer.1} parent=0 // pred_fallthru
    _

</llo_original>
